<compile_context>
chip_gen: v7x
topology: tpu7x:2x2x1
jax: 0.10.0
libtpu: 0.0.40
codegen_flags: <defaults>
</compile_context>

<pallas_src>
import functools
import math

import jax
import jax.numpy as jnp
import numpy as np
from jax.experimental import pallas as pl
from jax.experimental.pallas import tpu as pltpu


def mha_kernel(*refs, bt, seq, hid, n_heads, head_dim, inv_scale,
               fused_qkv, return_attention, compute_dtype):
    """One grid step: full MHA forward for `bt` batch elements.

    Ref order:
      fused_qkv=True : (x, w_qkv, b_qkv, w_o, b_o, out[, attn], x_slab)
      fused_qkv=False: (q, k, v, w_qkv, b_qkv, w_o, b_o, out[, attn], x_slab)
    """
    if fused_qkv:
        q_ref = k_ref = v_ref = refs[0]
        w_qkv_ref, b_qkv_ref, w_o_ref, b_o_ref = refs[1:5]
        rest = refs[5:]
    else:
        q_ref, k_ref, v_ref = refs[0:3]
        w_qkv_ref, b_qkv_ref, w_o_ref, b_o_ref = refs[3:7]
        rest = refs[7:]
    if return_attention:
        out_ref, attn_ref, x_slab = rest
    else:
        out_ref, x_slab = rest
        attn_ref = None

    H = hid

    def cast(x):
        return x if x.dtype == compute_dtype else x.astype(compute_dtype)

    def mm(a, b):  # MXU matmul with fp32 accumulation
        return jnp.dot(cast(a), cast(b), preferred_element_type=jnp.float32)

    w_qkv = w_qkv_ref[...]            # (H, 3H)
    b_qkv = b_qkv_ref[...]            # (1, 3H)

    if fused_qkv:
        # Single (M, H) @ (H, 3H) projection for self-attention.
        qkv = mm(q_ref[...], w_qkv) + b_qkv
        Q = qkv[:, 0:H] * inv_scale                 # fold 1/sqrt(head_dim) into Q
        K = qkv[:, H:2 * H]
        V = qkv[:, 2 * H:3 * H]
    else:
        Q = (mm(q_ref[...], w_qkv[:, 0:H]) + b_qkv[:, 0:H]) * inv_scale
        K = mm(k_ref[...], w_qkv[:, H:2 * H]) + b_qkv[:, H:2 * H]
        V = mm(v_ref[...], w_qkv[:, 2 * H:3 * H]) + b_qkv[:, 2 * H:3 * H]

    def to_heads(x):
        # (bt*S, H) -> (bt*n_heads, S, head_dim), batch-major / head-minor.
        parts = []
        for b in range(bt):
            rows = x[b * seq:(b + 1) * seq, :]
            for h in range(n_heads):
                parts.append(rows[None, :, h * head_dim:(h + 1) * head_dim])
        return jnp.concatenate(parts, axis=0)

    Qh, Kh, Vh = to_heads(Q), to_heads(K), to_heads(V)

    # Head-batched QK^T (no per-head loop, no explicit Kh.T transpose).
    energy = jnp.einsum("bqd,bkd->bqk", cast(Qh), cast(Kh),
                        preferred_element_type=jnp.float32)      # (bt*nh, S, S)

    # Numerically stable softmax in fp32; normalization via EUP approx
    # reciprocal refined with one Newton step (keeps ~fp32 accuracy).
    m = jnp.max(energy, axis=-1, keepdims=True)
    p = jnp.exp(energy - m)
    denom = jnp.sum(p, axis=-1, keepdims=True)
    r = pl.reciprocal(denom, approx=True)
    r = r * (2.0 - denom * r)
    attn = p * r

    if return_attention:
        attn_ref[...] = attn

    # TODO(synk): nn.Dropout on the attention weights omitted (eval / p=0).
    # TODO(synk): optional `mask` argument of forward() not implemented.
    x = jnp.einsum("bqk,bkd->bqd", cast(attn), cast(Vh),
                   preferred_element_type=jnp.float32)           # (bt*nh, S, hd)

    # Merge heads into a lane-dense (bt*S, H) slab via scratch slice writes
    # (avoids a last-axis concatenate / cross-lane relayout).
    for b in range(bt):
        for h in range(n_heads):
            x_slab[b * seq:(b + 1) * seq,
                   h * head_dim:(h + 1) * head_dim] = x[b * n_heads + h]

    out_ref[...] = mm(x_slab[...], w_o_ref[...]) + b_o_ref[...]


def _choose_batch_tile(B, S, target_rows=128):
    """Smallest divisor of B whose tile has >= target_rows rows (fills MXU M);
    otherwise the whole batch (maximize M, amortize per-grid-step overhead)."""
    for d in range(1, B + 1):
        if B % d == 0 and d * S >= target_rows:
            return d
    return B


def multi_head_attention(query, key, value, params, n_heads, *,
                         return_attention=True, batch_tile=None,
                         compute_dtype=jnp.float32):
    """query/key/value: (B, S, H) float32.

    Returns out (B, S, H) and, if return_attention, attn (B, n_heads, S, S).
    """
    B, S, H = query.shape
    assert H % n_heads == 0
    head_dim = H // n_heads
    inv_scale = 1.0 / math.sqrt(head_dim)

    fused = (key is query) and (value is query)       # self-attention fast path
    bt = batch_tile if batch_tile is not None else _choose_batch_tile(B, S)
    assert B % bt == 0
    grid = (B // bt,)
    M = bt * S

    # Lane-dense 2-D activations; all 3-D <-> 2-D plumbing stays in the wrapper.
    q2 = query.reshape(B * S, H)

    act_spec = pl.BlockSpec((M, H), lambda i: (i, 0))
    w_qkv_spec = pl.BlockSpec((H, 3 * H), lambda i: (0, 0))   # resident weights
    b_qkv_spec = pl.BlockSpec((1, 3 * H), lambda i: (0, 0))
    w_o_spec = pl.BlockSpec((H, H), lambda i: (0, 0))
    b_o_spec = pl.BlockSpec((1, H), lambda i: (0, 0))

    if fused:
        inputs = (q2, params["wqkv"], params["bqkv"], params["wo"], params["bo"])
        in_specs = [act_spec, w_qkv_spec, b_qkv_spec, w_o_spec, b_o_spec]
    else:
        inputs = (q2, key.reshape(B * S, H), value.reshape(B * S, H),
                  params["wqkv"], params["bqkv"], params["wo"], params["bo"])
        in_specs = [act_spec, act_spec, act_spec,
                    w_qkv_spec, b_qkv_spec, w_o_spec, b_o_spec]

    out_shape = [jax.ShapeDtypeStruct((B * S, H), jnp.float32)]
    out_specs = [pl.BlockSpec((M, H), lambda i: (i, 0))]
    if return_attention:
        out_shape.append(jax.ShapeDtypeStruct((B * n_heads, S, S), jnp.float32))
        out_specs.append(pl.BlockSpec((bt * n_heads, S, S), lambda i: (i, 0, 0)))

    kernel = functools.partial(
        mha_kernel, bt=bt, seq=S, hid=H, n_heads=n_heads, head_dim=head_dim,
        inv_scale=inv_scale, fused_qkv=fused, return_attention=return_attention,
        compute_dtype=compute_dtype)

    results = pl.pallas_call(
        kernel,
        grid_spec=pltpu.PrefetchScalarGridSpec(
            num_scalar_prefetch=0,
            grid=grid,
            in_specs=in_specs,
            out_specs=out_specs,
            scratch_shapes=[pltpu.VMEM((M, H), jnp.float32)],
        ),
        out_shape=tuple(out_shape),
        compiler_params=pltpu.CompilerParams(
            dimension_semantics=("parallel",)),
    )(*inputs)

    out = results[0].reshape(B, S, H)
    if return_attention:
        attn = results[1].reshape(B, n_heads, S, S)
        return out, attn
    return out


def init_params(key, hid_dim):
    """nn.Linear-style init; Q/K/V weights packed as (H, 3H), biases (1, 3H)."""
    bound = 1.0 / math.sqrt(hid_dim)
    k0, k1, k2, k3 = jax.random.split(key, 4)
    return {
        "wqkv": jax.random.uniform(k0, (hid_dim, 3 * hid_dim), jnp.float32,
                                   -bound, bound),
        "bqkv": jax.random.uniform(k1, (1, 3 * hid_dim), jnp.float32,
                                   -bound, bound),
        "wo": jax.random.uniform(k2, (hid_dim, hid_dim), jnp.float32,
                                 -bound, bound),
        "bo": jax.random.uniform(k3, (1, hid_dim), jnp.float32, -bound, bound),
    }


def reference_mha(q, k, v, p, n_heads):
    """Pure-JAX reference mirroring the PyTorch forward exactly."""
    B, S, H = q.shape
    hd = H // n_heads
    wqkv, bqkv = p["wqkv"], p["bqkv"]
    Q = q @ wqkv[:, 0:H] + bqkv[:, 0:H]
    K = k @ wqkv[:, H:2 * H] + bqkv[:, H:2 * H]
    V = v @ wqkv[:, 2 * H:3 * H] + bqkv[:, 2 * H:3 * H]

    def split(x):
        return x.reshape(B, S, n_heads, hd).transpose(0, 2, 1, 3)

    Qh, Kh, Vh = split(Q), split(K), split(V)
    energy = jnp.einsum("bhqd,bhkd->bhqk", Qh, Kh) / math.sqrt(hd)
    attn = jax.nn.softmax(energy, axis=-1)
    x = jnp.einsum("bhqk,bhkd->bhqd", attn, Vh)
    x = x.transpose(0, 2, 1, 3).reshape(B, S, H)
    out = x @ p["wo"] + p["bo"]
    return out, attn


if __name__ == "__main__":
    B, S, H, NH = 2, 8, 32, 4

    root = jax.random.PRNGKey(0)
    k_q, k_k, k_v, k_p = jax.random.split(root, 4)
    query = jax.random.normal(k_q, (B, S, H), jnp.float32)
    key_ = jax.random.normal(k_k, (B, S, H), jnp.float32)
    value = jax.random.normal(k_v, (B, S, H), jnp.float32)
    params = init_params(k_p, H)

    # 1) Cross-attention (distinct q/k/v): sliced-weight projection path.
    out, attn = multi_head_attention(query, key_, value, params, NH)
    jax.block_until_ready((out, attn))
    out_ref, attn_ref = reference_mha(query, key_, value, params, NH)
    np.testing.assert_allclose(np.asarray(out), np.asarray(out_ref),
                               rtol=1e-4, atol=1e-4)
    np.testing.assert_allclose(np.asarray(attn), np.asarray(attn_ref),
                               rtol=1e-4, atol=1e-4)

    # 2) Self-attention (query is key is value): fused (H, 3H) QKV matmul path.
    out_s, attn_s = multi_head_attention(query, query, query, params, NH)
    jax.block_until_ready((out_s, attn_s))
    out_sr, attn_sr = reference_mha(query, query, query, params, NH)
    np.testing.assert_allclose(np.asarray(out_s), np.asarray(out_sr),
                               rtol=1e-4, atol=1e-4)
    np.testing.assert_allclose(np.asarray(attn_s), np.asarray(attn_sr),
                               rtol=1e-4, atol=1e-4)

    # 3) Output-only variant (skips the non-lane-dense attention writeback).
    out_only = multi_head_attention(query, key_, value, params, NH,
                                    return_attention=False)
    jax.block_until_ready(out_only)
    np.testing.assert_allclose(np.asarray(out_only), np.asarray(out_ref),
                               rtol=1e-4, atol=1e-4)

    print("KERNEL_OK")
</pallas_src>

<mosaic_0001>
module attributes {stable_mosaic.version = 11 : i64} {
  func.func @mha_kernel(%arg0: i32, %arg1: memref<16x32xf32, #tpu.memory_space<vmem>>, %arg2: memref<16x32xf32, #tpu.memory_space<vmem>>, %arg3: memref<16x32xf32, #tpu.memory_space<vmem>>, %arg4: memref<32x96xf32, #tpu.memory_space<vmem>>, %arg5: memref<1x96xf32, #tpu.memory_space<vmem>>, %arg6: memref<32x32xf32, #tpu.memory_space<vmem>>, %arg7: memref<1x32xf32, #tpu.memory_space<vmem>>, %arg8: memref<16x32xf32, #tpu.memory_space<vmem>>, %arg9: memref<8x8x8xf32, #tpu.memory_space<vmem>>, %arg10: memref<16x32xf32, #tpu.memory_space<vmem>>) attributes {dimension_semantics = [#tpu.dimension_semantics<parallel>], iteration_bounds = array<i64: 1>, scalar_prefetch = 0 : i64, scratch_operands = 1 : i64, tpu.core_type = #tpu.core_type<tc>, window_params = [{transform_indices = @transform_0, window_bounds = array<i64: 16, 32>}, {transform_indices = @transform_1, window_bounds = array<i64: 16, 32>}, {transform_indices = @transform_2, window_bounds = array<i64: 16, 32>}, {pipeline_mode = #tpu.pipeline_mode<synchronous>, transform_indices = @transform_3, window_bounds = array<i64: 32, 96>}, {pipeline_mode = #tpu.pipeline_mode<synchronous>, transform_indices = @transform_4, window_bounds = array<i64: 1, 96>}, {pipeline_mode = #tpu.pipeline_mode<synchronous>, transform_indices = @transform_5, window_bounds = array<i64: 32, 32>}, {pipeline_mode = #tpu.pipeline_mode<synchronous>, transform_indices = @transform_6, window_bounds = array<i64: 1, 32>}, {transform_indices = @transform_7, window_bounds = array<i64: 16, 32>}, {transform_indices = @transform_8, window_bounds = array<i64: 8, 8, 8>}]} {
    %c0 = arith.constant 0 : index
    %c0_0 = arith.constant 0 : index
    %0 = vector.load %arg4[%c0, %c0_0] : memref<32x96xf32, #tpu.memory_space<vmem>>, vector<32x96xf32>
    %c0_1 = arith.constant 0 : index
    %c0_2 = arith.constant 0 : index
    %1 = vector.load %arg5[%c0_1, %c0_2] : memref<1x96xf32, #tpu.memory_space<vmem>>, vector<1x96xf32>
    %c0_3 = arith.constant 0 : index
    %c0_4 = arith.constant 0 : index
    %2 = vector.load %arg1[%c0_3, %c0_4] : memref<16x32xf32, #tpu.memory_space<vmem>>, vector<16x32xf32>
    %3 = vector.extract_strided_slice %0 {offsets = [0, 0], sizes = [32, 32], strides = [1, 1]} : vector<32x96xf32> to vector<32x32xf32>
    %cst = arith.constant dense<0.000000e+00> : vector<16x32xf32>
    %4 = tpu.matmul %2, %3, %cst {dimension_numbers = #tpu.dot_dimension_numbers<[1], [0], [0], [1], [0, 0, 1, 1], [], []>} : vector<16x32xf32>, vector<32x32xf32>, vector<16x32xf32> -> vector<16x32xf32>
    %5 = vector.extract_strided_slice %1 {offsets = [0, 0], sizes = [1, 32], strides = [1, 1]} : vector<1x96xf32> to vector<1x32xf32>
    %6 = vector.broadcast %5 : vector<1x32xf32> to vector<16x32xf32>
    %7 = arith.addf %4, %6 : vector<16x32xf32>
    %cst_5 = arith.constant 0.353553385 : f32
    %8 = vector.broadcast %cst_5 : f32 to vector<16x32xf32>
    %9 = arith.mulf %7, %8 : vector<16x32xf32>
    %c0_6 = arith.constant 0 : index
    %c0_7 = arith.constant 0 : index
    %10 = vector.load %arg2[%c0_6, %c0_7] : memref<16x32xf32, #tpu.memory_space<vmem>>, vector<16x32xf32>
    %11 = vector.extract_strided_slice %0 {offsets = [0, 32], sizes = [32, 32], strides = [1, 1]} : vector<32x96xf32> to vector<32x32xf32>
    %cst_8 = arith.constant dense<0.000000e+00> : vector<16x32xf32>
    %12 = tpu.matmul %10, %11, %cst_8 {dimension_numbers = #tpu.dot_dimension_numbers<[1], [0], [0], [1], [0, 0, 1, 1], [], []>} : vector<16x32xf32>, vector<32x32xf32>, vector<16x32xf32> -> vector<16x32xf32>
    %13 = vector.extract_strided_slice %1 {offsets = [0, 32], sizes = [1, 32], strides = [1, 1]} : vector<1x96xf32> to vector<1x32xf32>
    %14 = vector.broadcast %13 : vector<1x32xf32> to vector<16x32xf32>
    %15 = arith.addf %12, %14 : vector<16x32xf32>
    %c0_9 = arith.constant 0 : index
    %c0_10 = arith.constant 0 : index
    %16 = vector.load %arg3[%c0_9, %c0_10] : memref<16x32xf32, #tpu.memory_space<vmem>>, vector<16x32xf32>
    %17 = vector.extract_strided_slice %0 {offsets = [0, 64], sizes = [32, 32], strides = [1, 1]} : vector<32x96xf32> to vector<32x32xf32>
    %cst_11 = arith.constant dense<0.000000e+00> : vector<16x32xf32>
    %18 = tpu.matmul %16, %17, %cst_11 {dimension_numbers = #tpu.dot_dimension_numbers<[1], [0], [0], [1], [0, 0, 1, 1], [], []>} : vector<16x32xf32>, vector<32x32xf32>, vector<16x32xf32> -> vector<16x32xf32>
    %19 = vector.extract_strided_slice %1 {offsets = [0, 64], sizes = [1, 32], strides = [1, 1]} : vector<1x96xf32> to vector<1x32xf32>
    %20 = vector.broadcast %19 : vector<1x32xf32> to vector<16x32xf32>
    %21 = arith.addf %18, %20 : vector<16x32xf32>
    %22 = vector.extract_strided_slice %9 {offsets = [0, 0], sizes = [8, 32], strides = [1, 1]} : vector<16x32xf32> to vector<8x32xf32>
    %23 = vector.extract_strided_slice %22 {offsets = [0, 0], sizes = [8, 8], strides = [1, 1]} : vector<8x32xf32> to vector<8x8xf32>
    %24 = vector.shape_cast %23 : vector<8x8xf32> to vector<1x8x8xf32>
    %25 = vector.extract_strided_slice %22 {offsets = [0, 8], sizes = [8, 8], strides = [1, 1]} : vector<8x32xf32> to vector<8x8xf32>
    %26 = vector.shape_cast %25 : vector<8x8xf32> to vector<1x8x8xf32>
    %27 = vector.extract_strided_slice %22 {offsets = [0, 16], sizes = [8, 8], strides = [1, 1]} : vector<8x32xf32> to vector<8x8xf32>
    %28 = vector.shape_cast %27 : vector<8x8xf32> to vector<1x8x8xf32>
    %29 = vector.extract_strided_slice %22 {offsets = [0, 24], sizes = [8, 8], strides = [1, 1]} : vector<8x32xf32> to vector<8x8xf32>
    %30 = vector.shape_cast %29 : vector<8x8xf32> to vector<1x8x8xf32>
    %31 = vector.extract_strided_slice %9 {offsets = [8, 0], sizes = [8, 32], strides = [1, 1]} : vector<16x32xf32> to vector<8x32xf32>
    %32 = vector.extract_strided_slice %31 {offsets = [0, 0], sizes = [8, 8], strides = [1, 1]} : vector<8x32xf32> to vector<8x8xf32>
    %33 = vector.shape_cast %32 : vector<8x8xf32> to vector<1x8x8xf32>
    %34 = vector.extract_strided_slice %31 {offsets = [0, 8], sizes = [8, 8], strides = [1, 1]} : vector<8x32xf32> to vector<8x8xf32>
    %35 = vector.shape_cast %34 : vector<8x8xf32> to vector<1x8x8xf32>
    %36 = vector.extract_strided_slice %31 {offsets = [0, 16], sizes = [8, 8], strides = [1, 1]} : vector<8x32xf32> to vector<8x8xf32>
    %37 = vector.shape_cast %36 : vector<8x8xf32> to vector<1x8x8xf32>
    %38 = vector.extract_strided_slice %31 {offsets = [0, 24], sizes = [8, 8], strides = [1, 1]} : vector<8x32xf32> to vector<8x8xf32>
    %39 = vector.shape_cast %38 : vector<8x8xf32> to vector<1x8x8xf32>
    %40 = tpu.concatenate %24, %26, %28, %30, %33, %35, %37, %39 in 0 : vector<1x8x8xf32>, vector<1x8x8xf32>, vector<1x8x8xf32>, vector<1x8x8xf32>, vector<1x8x8xf32>, vector<1x8x8xf32>, vector<1x8x8xf32>, vector<1x8x8xf32> -> vector<8x8x8xf32>
    %41 = vector.extract_strided_slice %15 {offsets = [0, 0], sizes = [8, 32], strides = [1, 1]} : vector<16x32xf32> to vector<8x32xf32>
    %42 = vector.extract_strided_slice %41 {offsets = [0, 0], sizes = [8, 8], strides = [1, 1]} : vector<8x32xf32> to vector<8x8xf32>
    %43 = vector.shape_cast %42 : vector<8x8xf32> to vector<1x8x8xf32>
    %44 = vector.extract_strided_slice %41 {offsets = [0, 8], sizes = [8, 8], strides = [1, 1]} : vector<8x32xf32> to vector<8x8xf32>
    %45 = vector.shape_cast %44 : vector<8x8xf32> to vector<1x8x8xf32>
    %46 = vector.extract_strided_slice %41 {offsets = [0, 16], sizes = [8, 8], strides = [1, 1]} : vector<8x32xf32> to vector<8x8xf32>
    %47 = vector.shape_cast %46 : vector<8x8xf32> to vector<1x8x8xf32>
    %48 = vector.extract_strided_slice %41 {offsets = [0, 24], sizes = [8, 8], strides = [1, 1]} : vector<8x32xf32> to vector<8x8xf32>
    %49 = vector.shape_cast %48 : vector<8x8xf32> to vector<1x8x8xf32>
    %50 = vector.extract_strided_slice %15 {offsets = [8, 0], sizes = [8, 32], strides = [1, 1]} : vector<16x32xf32> to vector<8x32xf32>
    %51 = vector.extract_strided_slice %50 {offsets = [0, 0], sizes = [8, 8], strides = [1, 1]} : vector<8x32xf32> to vector<8x8xf32>
    %52 = vector.shape_cast %51 : vector<8x8xf32> to vector<1x8x8xf32>
    %53 = vector.extract_strided_slice %50 {offsets = [0, 8], sizes = [8, 8], strides = [1, 1]} : vector<8x32xf32> to vector<8x8xf32>
    %54 = vector.shape_cast %53 : vector<8x8xf32> to vector<1x8x8xf32>
    %55 = vector.extract_strided_slice %50 {offsets = [0, 16], sizes = [8, 8], strides = [1, 1]} : vector<8x32xf32> to vector<8x8xf32>
    %56 = vector.shape_cast %55 : vector<8x8xf32> to vector<1x8x8xf32>
    %57 = vector.extract_strided_slice %50 {offsets = [0, 24], sizes = [8, 8], strides = [1, 1]} : vector<8x32xf32> to vector<8x8xf32>
    %58 = vector.shape_cast %57 : vector<8x8xf32> to vector<1x8x8xf32>
    %59 = tpu.concatenate %43, %45, %47, %49, %52, %54, %56, %58 in 0 : vector<1x8x8xf32>, vector<1x8x8xf32>, vector<1x8x8xf32>, vector<1x8x8xf32>, vector<1x8x8xf32>, vector<1x8x8xf32>, vector<1x8x8xf32>, vector<1x8x8xf32> -> vector<8x8x8xf32>
    %60 = vector.extract_strided_slice %21 {offsets = [0, 0], sizes = [8, 32], strides = [1, 1]} : vector<16x32xf32> to vector<8x32xf32>
    %61 = vector.extract_strided_slice %60 {offsets = [0, 0], sizes = [8, 8], strides = [1, 1]} : vector<8x32xf32> to vector<8x8xf32>
    %62 = vector.shape_cast %61 : vector<8x8xf32> to vector<1x8x8xf32>
    %63 = vector.extract_strided_slice %60 {offsets = [0, 8], sizes = [8, 8], strides = [1, 1]} : vector<8x32xf32> to vector<8x8xf32>
    %64 = vector.shape_cast %63 : vector<8x8xf32> to vector<1x8x8xf32>
    %65 = vector.extract_strided_slice %60 {offsets = [0, 16], sizes = [8, 8], strides = [1, 1]} : vector<8x32xf32> to vector<8x8xf32>
    %66 = vector.shape_cast %65 : vector<8x8xf32> to vector<1x8x8xf32>
    %67 = vector.extract_strided_slice %60 {offsets = [0, 24], sizes = [8, 8], strides = [1, 1]} : vector<8x32xf32> to vector<8x8xf32>
    %68 = vector.shape_cast %67 : vector<8x8xf32> to vector<1x8x8xf32>
    %69 = vector.extract_strided_slice %21 {offsets = [8, 0], sizes = [8, 32], strides = [1, 1]} : vector<16x32xf32> to vector<8x32xf32>
    %70 = vector.extract_strided_slice %69 {offsets = [0, 0], sizes = [8, 8], strides = [1, 1]} : vector<8x32xf32> to vector<8x8xf32>
    %71 = vector.shape_cast %70 : vector<8x8xf32> to vector<1x8x8xf32>
    %72 = vector.extract_strided_slice %69 {offsets = [0, 8], sizes = [8, 8], strides = [1, 1]} : vector<8x32xf32> to vector<8x8xf32>
    %73 = vector.shape_cast %72 : vector<8x8xf32> to vector<1x8x8xf32>
    %74 = vector.extract_strided_slice %69 {offsets = [0, 16], sizes = [8, 8], strides = [1, 1]} : vector<8x32xf32> to vector<8x8xf32>
    %75 = vector.shape_cast %74 : vector<8x8xf32> to vector<1x8x8xf32>
    %76 = vector.extract_strided_slice %69 {offsets = [0, 24], sizes = [8, 8], strides = [1, 1]} : vector<8x32xf32> to vector<8x8xf32>
    %77 = vector.shape_cast %76 : vector<8x8xf32> to vector<1x8x8xf32>
    %78 = tpu.concatenate %62, %64, %66, %68, %71, %73, %75, %77 in 0 : vector<1x8x8xf32>, vector<1x8x8xf32>, vector<1x8x8xf32>, vector<1x8x8xf32>, vector<1x8x8xf32>, vector<1x8x8xf32>, vector<1x8x8xf32>, vector<1x8x8xf32> -> vector<8x8x8xf32>
    "tpu.trace_start"() <{level = 10 : i32, message = "bqd,bkd->bqk"}> : () -> ()
    %cst_12 = arith.constant dense<0.000000e+00> : vector<8x8x8xf32>
    %79 = tpu.matmul %40, %59, %cst_12 {dimension_numbers = #tpu.dot_dimension_numbers<[2], [2], [1], [1], [0, 0, 0, 1, 1, 1], [0], [0]>} : vector<8x8x8xf32>, vector<8x8x8xf32>, vector<8x8x8xf32> -> vector<8x8x8xf32>
    "tpu.trace_stop"() : () -> ()
    %cst_13 = arith.constant dense<0xFF800000> : vector<8x8xf32>
    %80 = vector.multi_reduction <maximumf>, %79, %cst_13 [2] : vector<8x8x8xf32> to vector<8x8xf32>
    %81 = vector.shape_cast %80 : vector<8x8xf32> to vector<8x8x1xf32>
    %82 = vector.broadcast %81 : vector<8x8x1xf32> to vector<8x8x8xf32>
    %83 = arith.subf %79, %82 : vector<8x8x8xf32>
    %84 = math.exp %83 : vector<8x8x8xf32>
    %cst_14 = arith.constant dense<0.000000e+00> : vector<8x8xf32>
    %85 = vector.multi_reduction <add>, %84, %cst_14 [2] : vector<8x8x8xf32> to vector<8x8xf32>
    %86 = vector.shape_cast %85 : vector<8x8xf32> to vector<8x8x1xf32>
    %87 = tpu.reciprocal %86 {approx = true} : vector<8x8x1xf32> -> vector<8x8x1xf32>
    %88 = arith.mulf %86, %87 : vector<8x8x1xf32>
    %cst_15 = arith.constant 2.000000e+00 : f32
    %89 = vector.broadcast %cst_15 : f32 to vector<8x8x1xf32>
    %90 = arith.subf %89, %88 : vector<8x8x1xf32>
    %91 = arith.mulf %87, %90 : vector<8x8x1xf32>
    %92 = vector.broadcast %91 : vector<8x8x1xf32> to vector<8x8x8xf32>
    %93 = arith.mulf %84, %92 : vector<8x8x8xf32>
    %c0_16 = arith.constant 0 : index
    %c0_17 = arith.constant 0 : index
    %c0_18 = arith.constant 0 : index
    %94 = vector.load %arg9[%c0_16, %c0_17, %c0_18] : memref<8x8x8xf32, #tpu.memory_space<vmem>>, vector<8x8x8xf32>
    tpu.vector_store %arg9[%c0_16, %c0_17, %c0_18], %93 {strides = array<i32>} : memref<8x8x8xf32, #tpu.memory_space<vmem>>, vector<8x8x8xf32>,
    "tpu.trace_start"() <{level = 10 : i32, message = "bqk,bkd->bqd"}> : () -> ()
    %cst_19 = arith.constant dense<0.000000e+00> : vector<8x8x8xf32>
    %95 = tpu.matmul %93, %78, %cst_19 {dimension_numbers = #tpu.dot_dimension_numbers<[2], [1], [1], [2], [0, 0, 0, 1, 1, 2], [0], [0]>} : vector<8x8x8xf32>, vector<8x8x8xf32>, vector<8x8x8xf32> -> vector<8x8x8xf32>
    "tpu.trace_stop"() : () -> ()
    %96 = vector.extract_strided_slice %95 {offsets = [0, 0, 0], sizes = [1, 8, 8], strides = [1, 1, 1]} : vector<8x8x8xf32> to vector<1x8x8xf32>
    %97 = vector.shape_cast %96 : vector<1x8x8xf32> to vector<8x8xf32>
    %c0_20 = arith.constant 0 : index
    %c0_21 = arith.constant 0 : index
    %98 = vector.load %arg10[%c0_20, %c0_21] : memref<16x32xf32, #tpu.memory_space<vmem>>, vector<8x8xf32>
    tpu.vector_store %arg10[%c0_20, %c0_21], %97 {strides = array<i32>} : memref<16x32xf32, #tpu.memory_space<vmem>>, vector<8x8xf32>,
    %99 = vector.extract_strided_slice %95 {offsets = [1, 0, 0], sizes = [1, 8, 8], strides = [1, 1, 1]} : vector<8x8x8xf32> to vector<1x8x8xf32>
    %100 = vector.shape_cast %99 : vector<1x8x8xf32> to vector<8x8xf32>
    %c0_22 = arith.constant 0 : index
    %c8 = arith.constant 8 : index
    %101 = vector.load %arg10[%c0_22, %c8] : memref<16x32xf32, #tpu.memory_space<vmem>>, vector<8x8xf32>
    tpu.vector_store %arg10[%c0_22, %c8], %100 {strides = array<i32>} : memref<16x32xf32, #tpu.memory_space<vmem>>, vector<8x8xf32>,
    %102 = vector.extract_strided_slice %95 {offsets = [2, 0, 0], sizes = [1, 8, 8], strides = [1, 1, 1]} : vector<8x8x8xf32> to vector<1x8x8xf32>
    %103 = vector.shape_cast %102 : vector<1x8x8xf32> to vector<8x8xf32>
    %c0_23 = arith.constant 0 : index
    %c16 = arith.constant 16 : index
    %104 = vector.load %arg10[%c0_23, %c16] : memref<16x32xf32, #tpu.memory_space<vmem>>, vector<8x8xf32>
    tpu.vector_store %arg10[%c0_23, %c16], %103 {strides = array<i32>} : memref<16x32xf32, #tpu.memory_space<vmem>>, vector<8x8xf32>,
    %105 = vector.extract_strided_slice %95 {offsets = [3, 0, 0], sizes = [1, 8, 8], strides = [1, 1, 1]} : vector<8x8x8xf32> to vector<1x8x8xf32>
    %106 = vector.shape_cast %105 : vector<1x8x8xf32> to vector<8x8xf32>
    %c0_24 = arith.constant 0 : index
    %c24 = arith.constant 24 : index
    %107 = vector.load %arg10[%c0_24, %c24] : memref<16x32xf32, #tpu.memory_space<vmem>>, vector<8x8xf32>
    tpu.vector_store %arg10[%c0_24, %c24], %106 {strides = array<i32>} : memref<16x32xf32, #tpu.memory_space<vmem>>, vector<8x8xf32>,
    %108 = vector.extract_strided_slice %95 {offsets = [4, 0, 0], sizes = [1, 8, 8], strides = [1, 1, 1]} : vector<8x8x8xf32> to vector<1x8x8xf32>
    %109 = vector.shape_cast %108 : vector<1x8x8xf32> to vector<8x8xf32>
    %c8_25 = arith.constant 8 : index
    %c0_26 = arith.constant 0 : index
    %110 = vector.load %arg10[%c8_25, %c0_26] : memref<16x32xf32, #tpu.memory_space<vmem>>, vector<8x8xf32>
    tpu.vector_store %arg10[%c8_25, %c0_26], %109 {strides = array<i32>} : memref<16x32xf32, #tpu.memory_space<vmem>>, vector<8x8xf32>,
    %111 = vector.extract_strided_slice %95 {offsets = [5, 0, 0], sizes = [1, 8, 8], strides = [1, 1, 1]} : vector<8x8x8xf32> to vector<1x8x8xf32>
    %112 = vector.shape_cast %111 : vector<1x8x8xf32> to vector<8x8xf32>
    %c8_27 = arith.constant 8 : index
    %c8_28 = arith.constant 8 : index
    %113 = vector.load %arg10[%c8_27, %c8_28] : memref<16x32xf32, #tpu.memory_space<vmem>>, vector<8x8xf32>
    tpu.vector_store %arg10[%c8_27, %c8_28], %112 {strides = array<i32>} : memref<16x32xf32, #tpu.memory_space<vmem>>, vector<8x8xf32>,
    %114 = vector.extract_strided_slice %95 {offsets = [6, 0, 0], sizes = [1, 8, 8], strides = [1, 1, 1]} : vector<8x8x8xf32> to vector<1x8x8xf32>
    %115 = vector.shape_cast %114 : vector<1x8x8xf32> to vector<8x8xf32>
    %c8_29 = arith.constant 8 : index
    %c16_30 = arith.constant 16 : index
    %116 = vector.load %arg10[%c8_29, %c16_30] : memref<16x32xf32, #tpu.memory_space<vmem>>, vector<8x8xf32>
    tpu.vector_store %arg10[%c8_29, %c16_30], %115 {strides = array<i32>} : memref<16x32xf32, #tpu.memory_space<vmem>>, vector<8x8xf32>,
    %117 = vector.extract_strided_slice %95 {offsets = [7, 0, 0], sizes = [1, 8, 8], strides = [1, 1, 1]} : vector<8x8x8xf32> to vector<1x8x8xf32>
    %118 = vector.shape_cast %117 : vector<1x8x8xf32> to vector<8x8xf32>
    %c8_31 = arith.constant 8 : index
    %c24_32 = arith.constant 24 : index
    %119 = vector.load %arg10[%c8_31, %c24_32] : memref<16x32xf32, #tpu.memory_space<vmem>>, vector<8x8xf32>
    tpu.vector_store %arg10[%c8_31, %c24_32], %118 {strides = array<i32>} : memref<16x32xf32, #tpu.memory_space<vmem>>, vector<8x8xf32>,
    %c0_33 = arith.constant 0 : index
    %c0_34 = arith.constant 0 : index
    %120 = vector.load %arg10[%c0_33, %c0_34] : memref<16x32xf32, #tpu.memory_space<vmem>>, vector<16x32xf32>
    %c0_35 = arith.constant 0 : index
    %c0_36 = arith.constant 0 : index
    %121 = vector.load %arg6[%c0_35, %c0_36] : memref<32x32xf32, #tpu.memory_space<vmem>>, vector<32x32xf32>
    %cst_37 = arith.constant dense<0.000000e+00> : vector<16x32xf32>
    %122 = tpu.matmul %120, %121, %cst_37 {dimension_numbers = #tpu.dot_dimension_numbers<[1], [0], [0], [1], [0, 0, 1, 1], [], []>} : vector<16x32xf32>, vector<32x32xf32>, vector<16x32xf32> -> vector<16x32xf32>
    %c0_38 = arith.constant 0 : index
    %c0_39 = arith.constant 0 : index
    %123 = vector.load %arg7[%c0_38, %c0_39] : memref<1x32xf32, #tpu.memory_space<vmem>>, vector<1x32xf32>
    %124 = vector.broadcast %123 : vector<1x32xf32> to vector<16x32xf32>
    %125 = arith.addf %122, %124 : vector<16x32xf32>
    %c0_40 = arith.constant 0 : index
    %c0_41 = arith.constant 0 : index
    %126 = vector.load %arg8[%c0_40, %c0_41] : memref<16x32xf32, #tpu.memory_space<vmem>>, vector<16x32xf32>
    tpu.vector_store %arg8[%c0_40, %c0_41], %125 {strides = array<i32>} : memref<16x32xf32, #tpu.memory_space<vmem>>, vector<16x32xf32>,
    return
  }
  func.func @transform_0(%arg0: i32) -> (i32, i32) {
    %c0_i32 = arith.constant 0 : i32
    %c0_i32_0 = arith.constant 0 : i32
    return %arg0, %c0_i32 : i32, i32
  }
  func.func @transform_1(%arg0: i32) -> (i32, i32) {
    %c0_i32 = arith.constant 0 : i32
    %c0_i32_0 = arith.constant 0 : i32
    return %arg0, %c0_i32 : i32, i32
  }
  func.func @transform_2(%arg0: i32) -> (i32, i32) {
    %c0_i32 = arith.constant 0 : i32
    %c0_i32_0 = arith.constant 0 : i32
    return %arg0, %c0_i32 : i32, i32
  }
  func.func @transform_3(%arg0: i32) -> (i32, i32) {
    %c0_i32 = arith.constant 0 : i32
    %c0_i32_0 = arith.constant 0 : i32
    %c0_i32_1 = arith.constant 0 : i32
    return %c0_i32, %c0_i32_0 : i32, i32
  }
  func.func @transform_4(%arg0: i32) -> (i32, i32) {
    %c0_i32 = arith.constant 0 : i32
    %c0_i32_0 = arith.constant 0 : i32
    %c0_i32_1 = arith.constant 0 : i32
    return %c0_i32, %c0_i32_0 : i32, i32
  }
  func.func @transform_5(%arg0: i32) -> (i32, i32) {
    %c0_i32 = arith.constant 0 : i32
    %c0_i32_0 = arith.constant 0 : i32
    %c0_i32_1 = arith.constant 0 : i32
    return %c0_i32, %c0_i32_0 : i32, i32
  }
  func.func @transform_6(%arg0: i32) -> (i32, i32) {
    %c0_i32 = arith.constant 0 : i32
    %c0_i32_0 = arith.constant 0 : i32
    %c0_i32_1 = arith.constant 0 : i32
    return %c0_i32, %c0_i32_0 : i32, i32
  }
  func.func @transform_7(%arg0: i32) -> (i32, i32) {
    %c0_i32 = arith.constant 0 : i32
    %c0_i32_0 = arith.constant 0 : i32
    return %arg0, %c0_i32 : i32, i32
  }
  func.func @transform_8(%arg0: i32) -> (i32, i32, i32) {
    %c0_i32 = arith.constant 0 : i32
    %c0_i32_0 = arith.constant 0 : i32
    %c0_i32_1 = arith.constant 0 : i32
    return %arg0, %c0_i32, %c0_i32_0 : i32, i32, i32
  }
}

</mosaic_0001>

<llo_original>
// kernel: tpu_custom_call.1
$region0: #{tpu_custom_call.1}
  #allocation0 [shape = 'u32[]', space=smem, size = 0x4, offset = 0x4, fixed_abs, tag = 'smem constant byte address 0x4 - core index']
  #allocation1 [shape = 'u32[144,128]{1,0:T(1,128)}', space=vmem, size = 0x12000, scoped, tag = 'internal scratch']
  #allocation2 [shape = 'f32[16,32]{1,0:T(8,128)}', space=vmem, size = 0x2000, scoped, tag = 'scratch operand']
  %s0 = inlined_call_operand.hbm [shape: f32[16,32], index: 0, kind: input, shape index: {}]
  %s1 = inlined_call_operand.hbm [shape: f32[16,32], index: 1, kind: input, shape index: {}]
  %s2 = inlined_call_operand.hbm [shape: f32[16,32], index: 2, kind: input, shape index: {}]
  %s3 = inlined_call_operand.hbm [shape: f32[32,96], index: 3, kind: input, shape index: {}]
  %s4 = inlined_call_operand.vmem [shape: f32[1,96], index: 4, kind: input, shape index: {}]
  %s5 = inlined_call_operand.hbm [shape: f32[32,32], index: 5, kind: input, shape index: {}]
  %s6 = inlined_call_operand.vmem [shape: f32[1,32], index: 6, kind: input, shape index: {}]
  %s7 = inlined_call_operand.hbm [shape: f32[16,32], index: 7, kind: output, shape index: {0}]
  %s8 = inlined_call_operand.hbm [shape: f32[8,8,8], index: 8, kind: output, shape index: {1}]
  %9 = xla_tuple %s7, %s8
  %s10 = sld [smem:[#allocation0]]
  $region66: #{tpu_custom_call.1} parent=0
    _
  %s12 = ssub.s32 1, %s10
  %s13 = scalar_select 0, %s12, %s10
  $region1: #{tpu_custom_call.1} parent=0
    #allocation3 [shape = 'u8[8192]{0}', space=vmem, size = 0x2000, scoped, tag = 'input window, operand 0, single buffered']
    #allocation4 [shape = 's32[1]{0}', space=sflag, size = 0x4, scoped, tag = 'scoped memory for tpu_custom_call.1']
    #allocation5 [shape = 's32[1]{0}', space=sflag, size = 0x4, scoped, tag = 'scoped memory for tpu_custom_call.1']
    #allocation6 [shape = 'u8[8192]{0}', space=vmem, size = 0x2000, scoped, tag = 'input window, operand 1, single buffered']
    #allocation7 [shape = 's32[1]{0}', space=sflag, size = 0x4, scoped, tag = 'scoped memory for tpu_custom_call.1']
    #allocation8 [shape = 'u8[8192]{0}', space=vmem, size = 0x2000, scoped, tag = 'input window, operand 2, single buffered']
    #allocation9 [shape = 'u8[16384]{0}', space=vmem, size = 0x4000, scoped, tag = 'input window, operand 3, single buffered']
    #allocation10 [shape = 's32[1]{0}', space=sflag, size = 0x4, scoped, tag = 'scoped memory for tpu_custom_call.1']
    #allocation11 [shape = 'u8[16384]{0}', space=vmem, size = 0x4000, scoped, tag = 'input window, operand 5, single buffered']
    #allocation12 [shape = 'u8[8192]{0}', space=vmem, size = 0x2000, scoped, tag = 'output window, operand 0, single buffered']
    #allocation13 [shape = 'u8[32768]{0}', space=vmem, size = 0x8000, scoped, tag = 'output window, operand 1, single buffered']
    #allocation14 [shape = 's32[1]{0}', space=sflag, size = 0x4, scoped, tag = 'scoped memory for tpu_custom_call.1']
    %14 = vsyncpa [#allocation4], 0
    %15 = vsyncpa [#allocation7], 0
    %16 = vsyncpa [#allocation10], 0
    %17 = vsyncpa [#allocation5], 0
    %18 = vsyncpa [#allocation14], 0
    // Predicated region
    $region2: #{tpu_custom_call.1} parent=1 // pred_check
      _
    $region3: #{tpu_custom_call.1} parent=1 // pred_check_branch
      %20 = sbr.rel (0) target = $region5
    $region4: #{tpu_custom_call.1} parent=1 // pred_region
      %s22 = ssub.s32 256, 256
      %23 = vsyncadd [#allocation4], %s22
      %s24 = sshll.u32 [#allocation3], 4
      %s25 = int_to_ptr.vmem [resolvable:$true] %s24
      %30 = dma.hbm_to_vmem [thread:$0]  %s0, 256, %s25, [#allocation4], 128, 128, 8
    $region5: #{tpu_custom_call.1} parent=1 // pred_fallthru
      _
    // Predicated region
    $region6: #{tpu_custom_call.1} parent=1 // pred_check
      _
    $region7: #{tpu_custom_call.1} parent=1 // pred_check_branch
      %32 = sbr.rel (0) target = $region9
    $region8: #{tpu_custom_call.1} parent=1 // pred_region
      %s34 = ssub.s32 256, 256
      %35 = vsyncadd [#allocation7], %s34
      %s36 = sshll.u32 [#allocation6], 4
      %s37 = int_to_ptr.vmem [resolvable:$true] %s36
      %42 = dma.hbm_to_vmem [thread:$0]  %s1, 256, %s37, [#allocation7], 128, 128, 8
    $region9: #{tpu_custom_call.1} parent=1 // pred_fallthru
      _
    // Predicated region
    $region10: #{tpu_custom_call.1} parent=1 // pred_check
      _
    $region11: #{tpu_custom_call.1} parent=1 // pred_check_branch
      %44 = sbr.rel (0) target = $region13
    $region12: #{tpu_custom_call.1} parent=1 // pred_region
      %s46 = ssub.s32 256, 256
      %47 = vsyncadd [#allocation7], %s46
      %s48 = sshll.u32 [#allocation8], 4
      %s49 = int_to_ptr.vmem [resolvable:$true] %s48
      %54 = dma.hbm_to_vmem [thread:$0]  %s2, 256, %s49, [#allocation7], 128, 128, 8
    $region13: #{tpu_custom_call.1} parent=1 // pred_fallthru
      _
    // Predicated region
    $region14: #{tpu_custom_call.1} parent=1 // pred_check
      _
    $region15: #{tpu_custom_call.1} parent=1 // pred_check_branch
      %56 = sbr.rel (0) target = $region17
    $region16: #{tpu_custom_call.1} parent=1 // pred_region
      %s58 = ssub.s32 512, 512
      %59 = vsyncadd [#allocation10], %s58
      %s60 = sshll.u32 [#allocation9], 4
      %s61 = int_to_ptr.vmem [resolvable:$true] %s60
      %66 = dma.hbm_to_vmem [thread:$0]  %s3, 512, %s61, [#allocation10], 128, 128, 8
    $region17: #{tpu_custom_call.1} parent=1 // pred_fallthru
      _
    // Predicated region
    $region18: #{tpu_custom_call.1} parent=1 // pred_check
      _
    $region19: #{tpu_custom_call.1} parent=1 // pred_check_branch
      %68 = sbr.rel (0) target = $region21
    $region20: #{tpu_custom_call.1} parent=1 // pred_region
      _
    $region21: #{tpu_custom_call.1} parent=1 // pred_fallthru
      _
    // Predicated region
    $region22: #{tpu_custom_call.1} parent=1 // pred_check
      _
    $region23: #{tpu_custom_call.1} parent=1 // pred_check_branch
      %70 = sbr.rel (0) target = $region25
    $region24: #{tpu_custom_call.1} parent=1 // pred_region
      %s72 = ssub.s32 512, 512
      %73 = vsyncadd [#allocation10], %s72
      %s74 = sshll.u32 [#allocation11], 4
      %s75 = int_to_ptr.vmem [resolvable:$true] %s74
      %80 = dma.hbm_to_vmem [thread:$0]  %s5, 512, %s75, [#allocation10], 128, 128, 8
    $region25: #{tpu_custom_call.1} parent=1 // pred_fallthru
      _
    // Predicated region
    $region26: #{tpu_custom_call.1} parent=1 // pred_check
      _
    $region27: #{tpu_custom_call.1} parent=1 // pred_check_branch
      %82 = sbr.rel (0) target = $region29
    $region28: #{tpu_custom_call.1} parent=1 // pred_region
      _
    $region29: #{tpu_custom_call.1} parent=1 // pred_fallthru
      _
    // Predicated region
    $region30: #{tpu_custom_call.1} parent=1 // pred_check
      _
    $region31: #{tpu_custom_call.1} parent=1 // pred_check_branch
      %84 = sbr.rel (0) target = $region33
    $region32: #{tpu_custom_call.1} parent=1 // pred_region
      %85 = dma.done [#allocation4], 256
    $region33: #{tpu_custom_call.1} parent=1 // pred_fallthru
      _
    // Predicated region
    $region34: #{tpu_custom_call.1} parent=1 // pred_check
      _
    $region35: #{tpu_custom_call.1} parent=1 // pred_check_branch
      %87 = sbr.rel (0) target = $region37
    $region36: #{tpu_custom_call.1} parent=1 // pred_region
      %88 = dma.done [#allocation7], 256
    $region37: #{tpu_custom_call.1} parent=1 // pred_fallthru
      _
    // Predicated region
    $region38: #{tpu_custom_call.1} parent=1 // pred_check
      _
    $region39: #{tpu_custom_call.1} parent=1 // pred_check_branch
      %90 = sbr.rel (0) target = $region41
    $region40: #{tpu_custom_call.1} parent=1 // pred_region
      %91 = dma.done [#allocation7], 256
    $region41: #{tpu_custom_call.1} parent=1 // pred_fallthru
      _
    // Predicated region
    $region42: #{tpu_custom_call.1} parent=1 // pred_check
      _
    $region43: #{tpu_custom_call.1} parent=1 // pred_check_branch
      %93 = sbr.rel (0) target = $region45
    $region44: #{tpu_custom_call.1} parent=1 // pred_region
      %94 = dma.done [#allocation10], 512
    $region45: #{tpu_custom_call.1} parent=1 // pred_fallthru
      _
    // Predicated region
    $region46: #{tpu_custom_call.1} parent=1 // pred_check
      _
    $region47: #{tpu_custom_call.1} parent=1 // pred_check_branch
      %96 = sbr.rel (0) target = $region49
    $region48: #{tpu_custom_call.1} parent=1 // pred_region
      %97 = dma.done [#allocation10], 512
    $region49: #{tpu_custom_call.1} parent=1 // pred_fallthru
      _
    %v98 = vld [vmem:[#allocation9] sm:$0xff]
    %v99 = vld [vmem:[#allocation9 + $0x8] sm:$0xff]
    %v100 = vld [vmem:[#allocation9 + $0x10] sm:$0xff]
    %v101 = vld [vmem:[#allocation9 + $0x18] sm:$0xff]
    %v102 = vld [vmem:[%s4] sm:$0x1]
    %v103 = vld [vmem:[#allocation3] sm:$0xff]
    %v104 = vld [vmem:[#allocation3 + $0x8] sm:$0xff]
    %v106 = vlaneseq
    %v107 = vshrl.u32 %v106, 7
    %v108 = vsub.s32 0, %v107
    %v109 = vrot.slane %v102, %v108
    %vm111 = vcmask 261120
    %v113 = vsel %vm111, %v103, 0
    %v116 = vsel %vm111, %v104, 0
    %118 = vmatprep.subr.mxu0 0.0
    %119 = vmatpush1.msra.mxu0 %v98
    %120 = vmatprep.subr.mxu0 0.0
    %121 = vmatpush1.msra.mxu0 %v99
    %122 = vmatprep.subr.mxu0 0.0
    %123 = vmatpush1.msra.mxu0 %v100
    %124 = vmatprep.subr.mxu0 0.0
    %125 = vmatpush1.msra.mxu0 %v101
    %126 = vmatprep.subr.mxu0 0.0
    %127 = vmatpush1.msra.mxu0 0.0
    %128 = vmatprep.subr.mxu0 0.0
    %129 = vmatpush1.msra.mxu0 0.0
    %130 = vmatprep.subr.mxu0 0.0
    %131 = vmatpush1.msra.mxu0 0.0
    %132 = vmatprep.subr.mxu0 0.0
    %133 = vmatpush1.msra.mxu0 0.0
    %134 = vmatprep.subr.mxu0 0.0
    %135 = vmatpush1.msra.mxu0 0.0
    %136 = vmatprep.subr.mxu0 0.0
    %137 = vmatpush1.msra.mxu0 0.0
    %138 = vmatprep.subr.mxu0 0.0
    %139 = vmatpush1.msra.mxu0 0.0
    %140 = vmatprep.subr.mxu0 0.0
    %141 = vmatpush1.msra.mxu0 0.0
    %142 = vmatprep.subr.mxu0 0.0
    %143 = vmatpush1.msra.mxu0 0.0
    %144 = vmatprep.subr.mxu0 0.0
    %145 = vmatpush1.msra.mxu0 0.0
    %146 = vmatprep.subr.mxu0 0.0
    %147 = vmatpush1.msra.mxu0 0.0
    %148 = vmatprep.subr.mxu0 0.0
    %149 = vmatpush1.msra.mxu0 0.0
    %150 = vmatprep.subr.mxu0 0.0
    %151 = vmatpush1.msra.mxu0 0.0
    %152 = vmatprep.subr.mxu0 0.0
    %153 = vmatpush1.msra.mxu0 0.0
    %154 = vmatprep.subr.mxu0 0.0
    %155 = vmatpush1.msra.mxu0 0.0
    %156 = vmatprep.subr.mxu0 0.0
    %157 = vmatpush1.msra.mxu0 0.0
    %158 = vmatprep.subr.mxu0 0.0
    %159 = vmatpush1.msra.mxu0 0.0
    %160 = vmatprep.subr.mxu0 0.0
    %161 = vmatpush1.msra.mxu0 0.0
    %162 = vmatprep.subr.mxu0 0.0
    %163 = vmatpush1.msra.mxu0 0.0
    %164 = vmatprep.subr.mxu0 0.0
    %165 = vmatpush1.msra.mxu0 0.0
    %166 = vmatprep.subr.mxu0 0.0
    %167 = vmatpush1.msra.mxu0 0.0
    %168 = vmatprep.subr.mxu0 0.0
    %169 = vmatpush1.msra.mxu0 0.0
    %170 = vmatprep.subr.mxu0 0.0
    %171 = vmatpush1.msra.mxu0 0.0
    %172 = vmatprep.subr.mxu0 0.0
    %173 = vmatpush1.msra.mxu0 0.0
    %174 = vmatprep.subr.mxu0 0.0
    %175 = vmatpush1.msra.mxu0 0.0
    %176 = vmatprep.subr.mxu0 0.0
    %177 = vmatpush1.msra.mxu0 0.0
    %178 = vmatprep.subr.mxu0 0.0
    %179 = vmatpush1.msra.mxu0 0.0
    %180 = vmatprep.subr.mxu0 0.0
    %181 = vmatpush1.msra.mxu0 0.0
    %182 = vmatprep.mubr.f32.mxu0 0.0
    %183 = vmatmul.mubr.f32.gmra.mrb[0].mxu0 %v113
    %v184 = vpop.f32.mrb[0].mxu0
    %v185 = vadd.f32 %v109, %v184
    %v186 = vpop.f32.mrb[0].mxu0
    %187 = vmatprep.mubr.f32.mxu0 0.0
    %188 = vmatmul.mubr.f32.gmra.mrb[0].mxu0 %v116
    %v189 = vpop.f32.mrb[0].mxu0
    %v190 = vadd.f32 %v109, %v189
    %v191 = vpop.f32.mrb[0].mxu0
    %192 = vdwg.mxu0
    %v193 = vmul.f32 %v185, 0.35355338
    %v194 = vmul.f32 %v190, 0.35355338
    %v195 = vld [vmem:[#allocation6] sm:$0xff]
    %v196 = vld [vmem:[#allocation6 + $0x8] sm:$0xff]
    %201 = vrot.lane.b32.xlu0 %v98, 96
    %v202 = vpop.permute.xlu0 %201
    %203 = vrot.lane.b32.xlu0 %v99, 96
    %v204 = vpop.permute.xlu0 %203
    %205 = vrot.lane.b32.xlu0 %v100, 96
    %v206 = vpop.permute.xlu0 %205
    %207 = vrot.lane.b32.xlu0 %v101, 96
    %v208 = vpop.permute.xlu0 %207
    %213 = vrot.lane.b32.xlu0 %v109, 96
    %v214 = vpop.permute.xlu0 %213
    %v217 = vsel %vm111, %v195, 0
    %v220 = vsel %vm111, %v196, 0
    %222 = vmatprep.subr.mxu0 0.0
    %223 = vmatpush1.msra.mxu0 %v202
    %224 = vmatprep.subr.mxu0 0.0
    %225 = vmatpush1.msra.mxu0 %v204
    %226 = vmatprep.subr.mxu0 0.0
    %227 = vmatpush1.msra.mxu0 %v206
    %228 = vmatprep.subr.mxu0 0.0
    %229 = vmatpush1.msra.mxu0 %v208
    %230 = vmatprep.subr.mxu0 0.0
    %231 = vmatpush1.msra.mxu0 0.0
    %232 = vmatprep.subr.mxu0 0.0
    %233 = vmatpush1.msra.mxu0 0.0
    %234 = vmatprep.subr.mxu0 0.0
    %235 = vmatpush1.msra.mxu0 0.0
    %236 = vmatprep.subr.mxu0 0.0
    %237 = vmatpush1.msra.mxu0 0.0
    %238 = vmatprep.subr.mxu0 0.0
    %239 = vmatpush1.msra.mxu0 0.0
    %240 = vmatprep.subr.mxu0 0.0
    %241 = vmatpush1.msra.mxu0 0.0
    %242 = vmatprep.subr.mxu0 0.0
    %243 = vmatpush1.msra.mxu0 0.0
    %244 = vmatprep.subr.mxu0 0.0
    %245 = vmatpush1.msra.mxu0 0.0
    %246 = vmatprep.subr.mxu0 0.0
    %247 = vmatpush1.msra.mxu0 0.0
    %248 = vmatprep.subr.mxu0 0.0
    %249 = vmatpush1.msra.mxu0 0.0
    %250 = vmatprep.subr.mxu0 0.0
    %251 = vmatpush1.msra.mxu0 0.0
    %252 = vmatprep.subr.mxu0 0.0
    %253 = vmatpush1.msra.mxu0 0.0
    %254 = vmatprep.subr.mxu0 0.0
    %255 = vmatpush1.msra.mxu0 0.0
    %256 = vmatprep.subr.mxu0 0.0
    %257 = vmatpush1.msra.mxu0 0.0
    %258 = vmatprep.subr.mxu0 0.0
    %259 = vmatpush1.msra.mxu0 0.0
    %260 = vmatprep.subr.mxu0 0.0
    %261 = vmatpush1.msra.mxu0 0.0
    %262 = vmatprep.subr.mxu0 0.0
    %263 = vmatpush1.msra.mxu0 0.0
    %264 = vmatprep.subr.mxu0 0.0
    %265 = vmatpush1.msra.mxu0 0.0
    %266 = vmatprep.subr.mxu0 0.0
    %267 = vmatpush1.msra.mxu0 0.0
    %268 = vmatprep.subr.mxu0 0.0
    %269 = vmatpush1.msra.mxu0 0.0
    %270 = vmatprep.subr.mxu0 0.0
    %271 = vmatpush1.msra.mxu0 0.0
    %272 = vmatprep.subr.mxu0 0.0
    %273 = vmatpush1.msra.mxu0 0.0
    %274 = vmatprep.subr.mxu0 0.0
    %275 = vmatpush1.msra.mxu0 0.0
    %276 = vmatprep.subr.mxu0 0.0
    %277 = vmatpush1.msra.mxu0 0.0
    %278 = vmatprep.subr.mxu0 0.0
    %279 = vmatpush1.msra.mxu0 0.0
    %280 = vmatprep.subr.mxu0 0.0
    %281 = vmatpush1.msra.mxu0 0.0
    %282 = vmatprep.subr.mxu0 0.0
    %283 = vmatpush1.msra.mxu0 0.0
    %284 = vmatprep.subr.mxu0 0.0
    %285 = vmatpush1.msra.mxu0 0.0
    %286 = vmatprep.mubr.f32.mxu0 0.0
    %287 = vmatmul.mubr.f32.gmra.mrb[0].mxu0 %v217
    %v288 = vpop.f32.mrb[0].mxu0
    %v289 = vadd.f32 %v214, %v288
    %v290 = vpop.f32.mrb[0].mxu0
    %291 = vmatprep.mubr.f32.mxu0 0.0
    %292 = vmatmul.mubr.f32.gmra.mrb[0].mxu0 %v220
    %v293 = vpop.f32.mrb[0].mxu0
    %v294 = vadd.f32 %v214, %v293
    %v295 = vpop.f32.mrb[0].mxu0
    %296 = vdwg.mxu0
    %v297 = vld [vmem:[#allocation8] sm:$0xff]
    %v298 = vld [vmem:[#allocation8 + $0x8] sm:$0xff]
    %299 = vrot.lane.b32.xlu0 %v98, 64
    %v300 = vpop.permute.xlu0 %299
    %301 = vrot.lane.b32.xlu0 %v99, 64
    %v302 = vpop.permute.xlu0 %301
    %303 = vrot.lane.b32.xlu0 %v100, 64
    %v304 = vpop.permute.xlu0 %303
    %305 = vrot.lane.b32.xlu0 %v101, 64
    %v306 = vpop.permute.xlu0 %305
    %311 = vrot.lane.b32.xlu0 %v109, 64
    %v312 = vpop.permute.xlu0 %311
    %v315 = vsel %vm111, %v297, 0
    %v318 = vsel %vm111, %v298, 0
    %320 = vmatprep.subr.mxu0 0.0
    %321 = vmatpush1.msra.mxu0 %v300
    %322 = vmatprep.subr.mxu0 0.0
    %323 = vmatpush1.msra.mxu0 %v302
    %324 = vmatprep.subr.mxu0 0.0
    %325 = vmatpush1.msra.mxu0 %v304
    %326 = vmatprep.subr.mxu0 0.0
    %327 = vmatpush1.msra.mxu0 %v306
    %328 = vmatprep.subr.mxu0 0.0
    %329 = vmatpush1.msra.mxu0 0.0
    %330 = vmatprep.subr.mxu0 0.0
    %331 = vmatpush1.msra.mxu0 0.0
    %332 = vmatprep.subr.mxu0 0.0
    %333 = vmatpush1.msra.mxu0 0.0
    %334 = vmatprep.subr.mxu0 0.0
    %335 = vmatpush1.msra.mxu0 0.0
    %336 = vmatprep.subr.mxu0 0.0
    %337 = vmatpush1.msra.mxu0 0.0
    %338 = vmatprep.subr.mxu0 0.0
    %339 = vmatpush1.msra.mxu0 0.0
    %340 = vmatprep.subr.mxu0 0.0
    %341 = vmatpush1.msra.mxu0 0.0
    %342 = vmatprep.subr.mxu0 0.0
    %343 = vmatpush1.msra.mxu0 0.0
    %344 = vmatprep.subr.mxu0 0.0
    %345 = vmatpush1.msra.mxu0 0.0
    %346 = vmatprep.subr.mxu0 0.0
    %347 = vmatpush1.msra.mxu0 0.0
    %348 = vmatprep.subr.mxu0 0.0
    %349 = vmatpush1.msra.mxu0 0.0
    %350 = vmatprep.subr.mxu0 0.0
    %351 = vmatpush1.msra.mxu0 0.0
    %352 = vmatprep.subr.mxu0 0.0
    %353 = vmatpush1.msra.mxu0 0.0
    %354 = vmatprep.subr.mxu0 0.0
    %355 = vmatpush1.msra.mxu0 0.0
    %356 = vmatprep.subr.mxu0 0.0
    %357 = vmatpush1.msra.mxu0 0.0
    %358 = vmatprep.subr.mxu0 0.0
    %359 = vmatpush1.msra.mxu0 0.0
    %360 = vmatprep.subr.mxu0 0.0
    %361 = vmatpush1.msra.mxu0 0.0
    %362 = vmatprep.subr.mxu0 0.0
    %363 = vmatpush1.msra.mxu0 0.0
    %364 = vmatprep.subr.mxu0 0.0
    %365 = vmatpush1.msra.mxu0 0.0
    %366 = vmatprep.subr.mxu0 0.0
    %367 = vmatpush1.msra.mxu0 0.0
    %368 = vmatprep.subr.mxu0 0.0
    %369 = vmatpush1.msra.mxu0 0.0
    %370 = vmatprep.subr.mxu0 0.0
    %371 = vmatpush1.msra.mxu0 0.0
    %372 = vmatprep.subr.mxu0 0.0
    %373 = vmatpush1.msra.mxu0 0.0
    %374 = vmatprep.subr.mxu0 0.0
    %375 = vmatpush1.msra.mxu0 0.0
    %376 = vmatprep.subr.mxu0 0.0
    %377 = vmatpush1.msra.mxu0 0.0
    %378 = vmatprep.subr.mxu0 0.0
    %379 = vmatpush1.msra.mxu0 0.0
    %380 = vmatprep.subr.mxu0 0.0
    %381 = vmatpush1.msra.mxu0 0.0
    %382 = vmatprep.subr.mxu0 0.0
    %383 = vmatpush1.msra.mxu0 0.0
    %384 = vmatprep.mubr.f32.mxu0 0.0
    %385 = vmatmul.mubr.f32.gmra.mrb[0].mxu0 %v315
    %v386 = vpop.f32.mrb[0].mxu0
    %v387 = vadd.f32 %v312, %v386
    %v388 = vpop.f32.mrb[0].mxu0
    %389 = vmatprep.mubr.f32.mxu0 0.0
    %390 = vmatmul.mubr.f32.gmra.mrb[0].mxu0 %v318
    %v391 = vpop.f32.mrb[0].mxu0
    %v392 = vadd.f32 %v312, %v391
    %v393 = vpop.f32.mrb[0].mxu0
    %394 = vdwg.mxu0
    %396 = vrot.lane.b32.xlu0 %v193, 120
    %v397 = vpop.permute.xlu0 %396
    %398 = vrot.lane.b32.xlu0 %v193, 112
    %v399 = vpop.permute.xlu0 %398
    %400 = vrot.lane.b32.xlu0 %v193, 104
    %v401 = vpop.permute.xlu0 %400
    %403 = vrot.lane.b32.xlu0 %v194, 120
    %v404 = vpop.permute.xlu0 %403
    %405 = vrot.lane.b32.xlu0 %v194, 112
    %v406 = vpop.permute.xlu0 %405
    %407 = vrot.lane.b32.xlu0 %v194, 104
    %v408 = vpop.permute.xlu0 %407
    %410 = vrot.lane.b32.xlu0 %v289, 120
    %v411 = vpop.permute.xlu0 %410
    %412 = vrot.lane.b32.xlu0 %v289, 112
    %v413 = vpop.permute.xlu0 %412
    %414 = vrot.lane.b32.xlu0 %v289, 104
    %v415 = vpop.permute.xlu0 %414
    %417 = vrot.lane.b32.xlu0 %v294, 120
    %v418 = vpop.permute.xlu0 %417
    %419 = vrot.lane.b32.xlu0 %v294, 112
    %v420 = vpop.permute.xlu0 %419
    %421 = vrot.lane.b32.xlu0 %v294, 104
    %v422 = vpop.permute.xlu0 %421
    %424 = vrot.lane.b32.xlu0 %v387, 120
    %v425 = vpop.permute.xlu0 %424
    %427 = vrot.lane.b32.xlu0 %v387, 112
    %v428 = vpop.permute.xlu0 %427
    %430 = vrot.lane.b32.xlu0 %v387, 104
    %v431 = vpop.permute.xlu0 %430
    %434 = vrot.lane.b32.xlu0 %v392, 120
    %v435 = vpop.permute.xlu0 %434
    %437 = vrot.lane.b32.xlu0 %v392, 112
    %v438 = vpop.permute.xlu0 %437
    %440 = vrot.lane.b32.xlu0 %v392, 104
    %v441 = vpop.permute.xlu0 %440
    %vm443 = vcmask 64512
    %v444 = vsel %vm443, %v193, 0
    %v446 = vsel %vm443, %v289, 0
    %448 = vmatprep.subr.mxu0 0.0
    %449 = vmatpush1.xpose.msra.mxu0 %v446
    %450 = vmatprep.subr.mxu0 0.0
    %451 = vmatpush1.xpose.msra.mxu0 0.0
    %452 = vmatprep.subr.mxu0 0.0
    %453 = vmatpush1.xpose.msra.mxu0 0.0
    %454 = vmatprep.subr.mxu0 0.0
    %455 = vmatpush1.xpose.msra.mxu0 0.0
    %456 = vmatprep.subr.mxu0 0.0
    %457 = vmatpush1.xpose.msra.mxu0 0.0
    %458 = vmatprep.subr.mxu0 0.0
    %459 = vmatpush1.xpose.msra.mxu0 0.0
    %460 = vmatprep.subr.mxu0 0.0
    %461 = vmatpush1.xpose.msra.mxu0 0.0
    %462 = vmatprep.subr.mxu0 0.0
    %463 = vmatpush1.xpose.msra.mxu0 0.0
    %464 = vmatprep.subr.mxu0 0.0
    %465 = vmatpush1.xpose.msra.mxu0 0.0
    %466 = vmatprep.subr.mxu0 0.0
    %467 = vmatpush1.xpose.msra.mxu0 0.0
    %468 = vmatprep.subr.mxu0 0.0
    %469 = vmatpush1.xpose.msra.mxu0 0.0
    %470 = vmatprep.subr.mxu0 0.0
    %471 = vmatpush1.xpose.msra.mxu0 0.0
    %472 = vmatprep.subr.mxu0 0.0
    %473 = vmatpush1.xpose.msra.mxu0 0.0
    %474 = vmatprep.subr.mxu0 0.0
    %475 = vmatpush1.xpose.msra.mxu0 0.0
    %476 = vmatprep.subr.mxu0 0.0
    %477 = vmatpush1.xpose.msra.mxu0 0.0
    %478 = vmatprep.subr.mxu0 0.0
    %479 = vmatpush1.xpose.msra.mxu0 0.0
    %480 = vmatprep.subr.mxu0 0.0
    %481 = vmatpush1.xpose.msra.mxu0 0.0
    %482 = vmatprep.subr.mxu0 0.0
    %483 = vmatpush1.xpose.msra.mxu0 0.0
    %484 = vmatprep.subr.mxu0 0.0
    %485 = vmatpush1.xpose.msra.mxu0 0.0
    %486 = vmatprep.subr.mxu0 0.0
    %487 = vmatpush1.xpose.msra.mxu0 0.0
    %488 = vmatprep.subr.mxu0 0.0
    %489 = vmatpush1.xpose.msra.mxu0 0.0
    %490 = vmatprep.subr.mxu0 0.0
    %491 = vmatpush1.xpose.msra.mxu0 0.0
    %492 = vmatprep.subr.mxu0 0.0
    %493 = vmatpush1.xpose.msra.mxu0 0.0
    %494 = vmatprep.subr.mxu0 0.0
    %495 = vmatpush1.xpose.msra.mxu0 0.0
    %496 = vmatprep.subr.mxu0 0.0
    %497 = vmatpush1.xpose.msra.mxu0 0.0
    %498 = vmatprep.subr.mxu0 0.0
    %499 = vmatpush1.xpose.msra.mxu0 0.0
    %500 = vmatprep.subr.mxu0 0.0
    %501 = vmatpush1.xpose.msra.mxu0 0.0
    %502 = vmatprep.subr.mxu0 0.0
    %503 = vmatpush1.xpose.msra.mxu0 0.0
    %504 = vmatprep.subr.mxu0 0.0
    %505 = vmatpush1.xpose.msra.mxu0 0.0
    %506 = vmatprep.subr.mxu0 0.0
    %507 = vmatpush1.xpose.msra.mxu0 0.0
    %508 = vmatprep.subr.mxu0 0.0
    %509 = vmatpush1.xpose.msra.mxu0 0.0
    %510 = vmatprep.subr.mxu0 0.0
    %511 = vmatpush1.xpose.msra.mxu0 0.0
    %512 = vmatprep.mubr.f32.mxu0 0.0
    %513 = vmatmul.mubr.f32.gmra.mrb[0].mxu0 %v444
    %v514 = vpop.f32.mrb[0].mxu0
    %v515 = vadd.f32 0.0, %v514
    %v516 = vpop.f32.mrb[0].mxu0
    %517 = vdwg.mxu0
    %v518 = vsel %vm443, %v397, 0
    %v520 = vsel %vm443, %v411, 0
    %522 = vmatprep.subr.mxu0 0.0
    %523 = vmatpush1.xpose.msra.mxu0 %v520
    %524 = vmatprep.subr.mxu0 0.0
    %525 = vmatpush1.xpose.msra.mxu0 0.0
    %526 = vmatprep.subr.mxu0 0.0
    %527 = vmatpush1.xpose.msra.mxu0 0.0
    %528 = vmatprep.subr.mxu0 0.0
    %529 = vmatpush1.xpose.msra.mxu0 0.0
    %530 = vmatprep.subr.mxu0 0.0
    %531 = vmatpush1.xpose.msra.mxu0 0.0
    %532 = vmatprep.subr.mxu0 0.0
    %533 = vmatpush1.xpose.msra.mxu0 0.0
    %534 = vmatprep.subr.mxu0 0.0
    %535 = vmatpush1.xpose.msra.mxu0 0.0
    %536 = vmatprep.subr.mxu0 0.0
    %537 = vmatpush1.xpose.msra.mxu0 0.0
    %538 = vmatprep.subr.mxu0 0.0
    %539 = vmatpush1.xpose.msra.mxu0 0.0
    %540 = vmatprep.subr.mxu0 0.0
    %541 = vmatpush1.xpose.msra.mxu0 0.0
    %542 = vmatprep.subr.mxu0 0.0
    %543 = vmatpush1.xpose.msra.mxu0 0.0
    %544 = vmatprep.subr.mxu0 0.0
    %545 = vmatpush1.xpose.msra.mxu0 0.0
    %546 = vmatprep.subr.mxu0 0.0
    %547 = vmatpush1.xpose.msra.mxu0 0.0
    %548 = vmatprep.subr.mxu0 0.0
    %549 = vmatpush1.xpose.msra.mxu0 0.0
    %550 = vmatprep.subr.mxu0 0.0
    %551 = vmatpush1.xpose.msra.mxu0 0.0
    %552 = vmatprep.subr.mxu0 0.0
    %553 = vmatpush1.xpose.msra.mxu0 0.0
    %554 = vmatprep.subr.mxu0 0.0
    %555 = vmatpush1.xpose.msra.mxu0 0.0
    %556 = vmatprep.subr.mxu0 0.0
    %557 = vmatpush1.xpose.msra.mxu0 0.0
    %558 = vmatprep.subr.mxu0 0.0
    %559 = vmatpush1.xpose.msra.mxu0 0.0
    %560 = vmatprep.subr.mxu0 0.0
    %561 = vmatpush1.xpose.msra.mxu0 0.0
    %562 = vmatprep.subr.mxu0 0.0
    %563 = vmatpush1.xpose.msra.mxu0 0.0
    %564 = vmatprep.subr.mxu0 0.0
    %565 = vmatpush1.xpose.msra.mxu0 0.0
    %566 = vmatprep.subr.mxu0 0.0
    %567 = vmatpush1.xpose.msra.mxu0 0.0
    %568 = vmatprep.subr.mxu0 0.0
    %569 = vmatpush1.xpose.msra.mxu0 0.0
    %570 = vmatprep.subr.mxu0 0.0
    %571 = vmatpush1.xpose.msra.mxu0 0.0
    %572 = vmatprep.subr.mxu0 0.0
    %573 = vmatpush1.xpose.msra.mxu0 0.0
    %574 = vmatprep.subr.mxu0 0.0
    %575 = vmatpush1.xpose.msra.mxu0 0.0
    %576 = vmatprep.subr.mxu0 0.0
    %577 = vmatpush1.xpose.msra.mxu0 0.0
    %578 = vmatprep.subr.mxu0 0.0
    %579 = vmatpush1.xpose.msra.mxu0 0.0
    %580 = vmatprep.subr.mxu0 0.0
    %581 = vmatpush1.xpose.msra.mxu0 0.0
    %582 = vmatprep.subr.mxu0 0.0
    %583 = vmatpush1.xpose.msra.mxu0 0.0
    %584 = vmatprep.subr.mxu0 0.0
    %585 = vmatpush1.xpose.msra.mxu0 0.0
    %586 = vmatprep.mubr.f32.mxu0 0.0
    %587 = vmatmul.mubr.f32.gmra.mrb[0].mxu0 %v518
    %v588 = vpop.f32.mrb[0].mxu0
    %v589 = vadd.f32 0.0, %v588
    %v590 = vpop.f32.mrb[0].mxu0
    %591 = vdwg.mxu0
    %v592 = vsel %vm443, %v399, 0
    %v594 = vsel %vm443, %v413, 0
    %596 = vmatprep.subr.mxu0 0.0
    %597 = vmatpush1.xpose.msra.mxu0 %v594
    %598 = vmatprep.subr.mxu0 0.0
    %599 = vmatpush1.xpose.msra.mxu0 0.0
    %600 = vmatprep.subr.mxu0 0.0
    %601 = vmatpush1.xpose.msra.mxu0 0.0
    %602 = vmatprep.subr.mxu0 0.0
    %603 = vmatpush1.xpose.msra.mxu0 0.0
    %604 = vmatprep.subr.mxu0 0.0
    %605 = vmatpush1.xpose.msra.mxu0 0.0
    %606 = vmatprep.subr.mxu0 0.0
    %607 = vmatpush1.xpose.msra.mxu0 0.0
    %608 = vmatprep.subr.mxu0 0.0
    %609 = vmatpush1.xpose.msra.mxu0 0.0
    %610 = vmatprep.subr.mxu0 0.0
    %611 = vmatpush1.xpose.msra.mxu0 0.0
    %612 = vmatprep.subr.mxu0 0.0
    %613 = vmatpush1.xpose.msra.mxu0 0.0
    %614 = vmatprep.subr.mxu0 0.0
    %615 = vmatpush1.xpose.msra.mxu0 0.0
    %616 = vmatprep.subr.mxu0 0.0
    %617 = vmatpush1.xpose.msra.mxu0 0.0
    %618 = vmatprep.subr.mxu0 0.0
    %619 = vmatpush1.xpose.msra.mxu0 0.0
    %620 = vmatprep.subr.mxu0 0.0
    %621 = vmatpush1.xpose.msra.mxu0 0.0
    %622 = vmatprep.subr.mxu0 0.0
    %623 = vmatpush1.xpose.msra.mxu0 0.0
    %624 = vmatprep.subr.mxu0 0.0
    %625 = vmatpush1.xpose.msra.mxu0 0.0
    %626 = vmatprep.subr.mxu0 0.0
    %627 = vmatpush1.xpose.msra.mxu0 0.0
    %628 = vmatprep.subr.mxu0 0.0
    %629 = vmatpush1.xpose.msra.mxu0 0.0
    %630 = vmatprep.subr.mxu0 0.0
    %631 = vmatpush1.xpose.msra.mxu0 0.0
    %632 = vmatprep.subr.mxu0 0.0
    %633 = vmatpush1.xpose.msra.mxu0 0.0
    %634 = vmatprep.subr.mxu0 0.0
    %635 = vmatpush1.xpose.msra.mxu0 0.0
    %636 = vmatprep.subr.mxu0 0.0
    %637 = vmatpush1.xpose.msra.mxu0 0.0
    %638 = vmatprep.subr.mxu0 0.0
    %639 = vmatpush1.xpose.msra.mxu0 0.0
    %640 = vmatprep.subr.mxu0 0.0
    %641 = vmatpush1.xpose.msra.mxu0 0.0
    %642 = vmatprep.subr.mxu0 0.0
    %643 = vmatpush1.xpose.msra.mxu0 0.0
    %644 = vmatprep.subr.mxu0 0.0
    %645 = vmatpush1.xpose.msra.mxu0 0.0
    %646 = vmatprep.subr.mxu0 0.0
    %647 = vmatpush1.xpose.msra.mxu0 0.0
    %648 = vmatprep.subr.mxu0 0.0
    %649 = vmatpush1.xpose.msra.mxu0 0.0
    %650 = vmatprep.subr.mxu0 0.0
    %651 = vmatpush1.xpose.msra.mxu0 0.0
    %652 = vmatprep.subr.mxu0 0.0
    %653 = vmatpush1.xpose.msra.mxu0 0.0
    %654 = vmatprep.subr.mxu0 0.0
    %655 = vmatpush1.xpose.msra.mxu0 0.0
    %656 = vmatprep.subr.mxu0 0.0
    %657 = vmatpush1.xpose.msra.mxu0 0.0
    %658 = vmatprep.subr.mxu0 0.0
    %659 = vmatpush1.xpose.msra.mxu0 0.0
    %660 = vmatprep.mubr.f32.mxu0 0.0
    %661 = vmatmul.mubr.f32.gmra.mrb[0].mxu0 %v592
    %v662 = vpop.f32.mrb[0].mxu0
    %v663 = vadd.f32 0.0, %v662
    %v664 = vpop.f32.mrb[0].mxu0
    %665 = vdwg.mxu0
    %v666 = vsel %vm443, %v401, 0
    %v668 = vsel %vm443, %v415, 0
    %670 = vmatprep.subr.mxu0 0.0
    %671 = vmatpush1.xpose.msra.mxu0 %v668
    %672 = vmatprep.subr.mxu0 0.0
    %673 = vmatpush1.xpose.msra.mxu0 0.0
    %674 = vmatprep.subr.mxu0 0.0
    %675 = vmatpush1.xpose.msra.mxu0 0.0
    %676 = vmatprep.subr.mxu0 0.0
    %677 = vmatpush1.xpose.msra.mxu0 0.0
    %678 = vmatprep.subr.mxu0 0.0
    %679 = vmatpush1.xpose.msra.mxu0 0.0
    %680 = vmatprep.subr.mxu0 0.0
    %681 = vmatpush1.xpose.msra.mxu0 0.0
    %682 = vmatprep.subr.mxu0 0.0
    %683 = vmatpush1.xpose.msra.mxu0 0.0
    %684 = vmatprep.subr.mxu0 0.0
    %685 = vmatpush1.xpose.msra.mxu0 0.0
    %686 = vmatprep.subr.mxu0 0.0
    %687 = vmatpush1.xpose.msra.mxu0 0.0
    %688 = vmatprep.subr.mxu0 0.0
    %689 = vmatpush1.xpose.msra.mxu0 0.0
    %690 = vmatprep.subr.mxu0 0.0
    %691 = vmatpush1.xpose.msra.mxu0 0.0
    %692 = vmatprep.subr.mxu0 0.0
    %693 = vmatpush1.xpose.msra.mxu0 0.0
    %694 = vmatprep.subr.mxu0 0.0
    %695 = vmatpush1.xpose.msra.mxu0 0.0
    %696 = vmatprep.subr.mxu0 0.0
    %697 = vmatpush1.xpose.msra.mxu0 0.0
    %698 = vmatprep.subr.mxu0 0.0
    %699 = vmatpush1.xpose.msra.mxu0 0.0
    %700 = vmatprep.subr.mxu0 0.0
    %701 = vmatpush1.xpose.msra.mxu0 0.0
    %702 = vmatprep.subr.mxu0 0.0
    %703 = vmatpush1.xpose.msra.mxu0 0.0
    %704 = vmatprep.subr.mxu0 0.0
    %705 = vmatpush1.xpose.msra.mxu0 0.0
    %706 = vmatprep.subr.mxu0 0.0
    %707 = vmatpush1.xpose.msra.mxu0 0.0
    %708 = vmatprep.subr.mxu0 0.0
    %709 = vmatpush1.xpose.msra.mxu0 0.0
    %710 = vmatprep.subr.mxu0 0.0
    %711 = vmatpush1.xpose.msra.mxu0 0.0
    %712 = vmatprep.subr.mxu0 0.0
    %713 = vmatpush1.xpose.msra.mxu0 0.0
    %714 = vmatprep.subr.mxu0 0.0
    %715 = vmatpush1.xpose.msra.mxu0 0.0
    %716 = vmatprep.subr.mxu0 0.0
    %717 = vmatpush1.xpose.msra.mxu0 0.0
    %718 = vmatprep.subr.mxu0 0.0
    %719 = vmatpush1.xpose.msra.mxu0 0.0
    %720 = vmatprep.subr.mxu0 0.0
    %721 = vmatpush1.xpose.msra.mxu0 0.0
    %722 = vmatprep.subr.mxu0 0.0
    %723 = vmatpush1.xpose.msra.mxu0 0.0
    %724 = vmatprep.subr.mxu0 0.0
    %725 = vmatpush1.xpose.msra.mxu0 0.0
    %726 = vmatprep.subr.mxu0 0.0
    %727 = vmatpush1.xpose.msra.mxu0 0.0
    %728 = vmatprep.subr.mxu0 0.0
    %729 = vmatpush1.xpose.msra.mxu0 0.0
    %730 = vmatprep.subr.mxu0 0.0
    %731 = vmatpush1.xpose.msra.mxu0 0.0
    %732 = vmatprep.subr.mxu0 0.0
    %733 = vmatpush1.xpose.msra.mxu0 0.0
    %734 = vmatprep.mubr.f32.mxu0 0.0
    %735 = vmatmul.mubr.f32.gmra.mrb[0].mxu0 %v666
    %v736 = vpop.f32.mrb[0].mxu0
    %v737 = vadd.f32 0.0, %v736
    %v738 = vpop.f32.mrb[0].mxu0
    %739 = vdwg.mxu0
    %v740 = vsel %vm443, %v194, 0
    %v742 = vsel %vm443, %v294, 0
    %744 = vmatprep.subr.mxu0 0.0
    %745 = vmatpush1.xpose.msra.mxu0 %v742
    %746 = vmatprep.subr.mxu0 0.0
    %747 = vmatpush1.xpose.msra.mxu0 0.0
    %748 = vmatprep.subr.mxu0 0.0
    %749 = vmatpush1.xpose.msra.mxu0 0.0
    %750 = vmatprep.subr.mxu0 0.0
    %751 = vmatpush1.xpose.msra.mxu0 0.0
    %752 = vmatprep.subr.mxu0 0.0
    %753 = vmatpush1.xpose.msra.mxu0 0.0
    %754 = vmatprep.subr.mxu0 0.0
    %755 = vmatpush1.xpose.msra.mxu0 0.0
    %756 = vmatprep.subr.mxu0 0.0
    %757 = vmatpush1.xpose.msra.mxu0 0.0
    %758 = vmatprep.subr.mxu0 0.0
    %759 = vmatpush1.xpose.msra.mxu0 0.0
    %760 = vmatprep.subr.mxu0 0.0
    %761 = vmatpush1.xpose.msra.mxu0 0.0
    %762 = vmatprep.subr.mxu0 0.0
    %763 = vmatpush1.xpose.msra.mxu0 0.0
    %764 = vmatprep.subr.mxu0 0.0
    %765 = vmatpush1.xpose.msra.mxu0 0.0
    %766 = vmatprep.subr.mxu0 0.0
    %767 = vmatpush1.xpose.msra.mxu0 0.0
    %768 = vmatprep.subr.mxu0 0.0
    %769 = vmatpush1.xpose.msra.mxu0 0.0
    %770 = vmatprep.subr.mxu0 0.0
    %771 = vmatpush1.xpose.msra.mxu0 0.0
    %772 = vmatprep.subr.mxu0 0.0
    %773 = vmatpush1.xpose.msra.mxu0 0.0
    %774 = vmatprep.subr.mxu0 0.0
    %775 = vmatpush1.xpose.msra.mxu0 0.0
    %776 = vmatprep.subr.mxu0 0.0
    %777 = vmatpush1.xpose.msra.mxu0 0.0
    %778 = vmatprep.subr.mxu0 0.0
    %779 = vmatpush1.xpose.msra.mxu0 0.0
    %780 = vmatprep.subr.mxu0 0.0
    %781 = vmatpush1.xpose.msra.mxu0 0.0
    %782 = vmatprep.subr.mxu0 0.0
    %783 = vmatpush1.xpose.msra.mxu0 0.0
    %784 = vmatprep.subr.mxu0 0.0
    %785 = vmatpush1.xpose.msra.mxu0 0.0
    %786 = vmatprep.subr.mxu0 0.0
    %787 = vmatpush1.xpose.msra.mxu0 0.0
    %788 = vmatprep.subr.mxu0 0.0
    %789 = vmatpush1.xpose.msra.mxu0 0.0
    %790 = vmatprep.subr.mxu0 0.0
    %791 = vmatpush1.xpose.msra.mxu0 0.0
    %792 = vmatprep.subr.mxu0 0.0
    %793 = vmatpush1.xpose.msra.mxu0 0.0
    %794 = vmatprep.subr.mxu0 0.0
    %795 = vmatpush1.xpose.msra.mxu0 0.0
    %796 = vmatprep.subr.mxu0 0.0
    %797 = vmatpush1.xpose.msra.mxu0 0.0
    %798 = vmatprep.subr.mxu0 0.0
    %799 = vmatpush1.xpose.msra.mxu0 0.0
    %800 = vmatprep.subr.mxu0 0.0
    %801 = vmatpush1.xpose.msra.mxu0 0.0
    %802 = vmatprep.subr.mxu0 0.0
    %803 = vmatpush1.xpose.msra.mxu0 0.0
    %804 = vmatprep.subr.mxu0 0.0
    %805 = vmatpush1.xpose.msra.mxu0 0.0
    %806 = vmatprep.subr.mxu0 0.0
    %807 = vmatpush1.xpose.msra.mxu0 0.0
    %808 = vmatprep.mubr.f32.mxu0 0.0
    %809 = vmatmul.mubr.f32.gmra.mrb[0].mxu0 %v740
    %v810 = vpop.f32.mrb[0].mxu0
    %v811 = vadd.f32 0.0, %v810
    %v812 = vpop.f32.mrb[0].mxu0
    %813 = vdwg.mxu0
    %v814 = vsel %vm443, %v404, 0
    %v816 = vsel %vm443, %v418, 0
    %818 = vmatprep.subr.mxu0 0.0
    %819 = vmatpush1.xpose.msra.mxu0 %v816
    %820 = vmatprep.subr.mxu0 0.0
    %821 = vmatpush1.xpose.msra.mxu0 0.0
    %822 = vmatprep.subr.mxu0 0.0
    %823 = vmatpush1.xpose.msra.mxu0 0.0
    %824 = vmatprep.subr.mxu0 0.0
    %825 = vmatpush1.xpose.msra.mxu0 0.0
    %826 = vmatprep.subr.mxu0 0.0
    %827 = vmatpush1.xpose.msra.mxu0 0.0
    %828 = vmatprep.subr.mxu0 0.0
    %829 = vmatpush1.xpose.msra.mxu0 0.0
    %830 = vmatprep.subr.mxu0 0.0
    %831 = vmatpush1.xpose.msra.mxu0 0.0
    %832 = vmatprep.subr.mxu0 0.0
    %833 = vmatpush1.xpose.msra.mxu0 0.0
    %834 = vmatprep.subr.mxu0 0.0
    %835 = vmatpush1.xpose.msra.mxu0 0.0
    %836 = vmatprep.subr.mxu0 0.0
    %837 = vmatpush1.xpose.msra.mxu0 0.0
    %838 = vmatprep.subr.mxu0 0.0
    %839 = vmatpush1.xpose.msra.mxu0 0.0
    %840 = vmatprep.subr.mxu0 0.0
    %841 = vmatpush1.xpose.msra.mxu0 0.0
    %842 = vmatprep.subr.mxu0 0.0
    %843 = vmatpush1.xpose.msra.mxu0 0.0
    %844 = vmatprep.subr.mxu0 0.0
    %845 = vmatpush1.xpose.msra.mxu0 0.0
    %846 = vmatprep.subr.mxu0 0.0
    %847 = vmatpush1.xpose.msra.mxu0 0.0
    %848 = vmatprep.subr.mxu0 0.0
    %849 = vmatpush1.xpose.msra.mxu0 0.0
    %850 = vmatprep.subr.mxu0 0.0
    %851 = vmatpush1.xpose.msra.mxu0 0.0
    %852 = vmatprep.subr.mxu0 0.0
    %853 = vmatpush1.xpose.msra.mxu0 0.0
    %854 = vmatprep.subr.mxu0 0.0
    %855 = vmatpush1.xpose.msra.mxu0 0.0
    %856 = vmatprep.subr.mxu0 0.0
    %857 = vmatpush1.xpose.msra.mxu0 0.0
    %858 = vmatprep.subr.mxu0 0.0
    %859 = vmatpush1.xpose.msra.mxu0 0.0
    %860 = vmatprep.subr.mxu0 0.0
    %861 = vmatpush1.xpose.msra.mxu0 0.0
    %862 = vmatprep.subr.mxu0 0.0
    %863 = vmatpush1.xpose.msra.mxu0 0.0
    %864 = vmatprep.subr.mxu0 0.0
    %865 = vmatpush1.xpose.msra.mxu0 0.0
    %866 = vmatprep.subr.mxu0 0.0
    %867 = vmatpush1.xpose.msra.mxu0 0.0
    %868 = vmatprep.subr.mxu0 0.0
    %869 = vmatpush1.xpose.msra.mxu0 0.0
    %870 = vmatprep.subr.mxu0 0.0
    %871 = vmatpush1.xpose.msra.mxu0 0.0
    %872 = vmatprep.subr.mxu0 0.0
    %873 = vmatpush1.xpose.msra.mxu0 0.0
    %874 = vmatprep.subr.mxu0 0.0
    %875 = vmatpush1.xpose.msra.mxu0 0.0
    %876 = vmatprep.subr.mxu0 0.0
    %877 = vmatpush1.xpose.msra.mxu0 0.0
    %878 = vmatprep.subr.mxu0 0.0
    %879 = vmatpush1.xpose.msra.mxu0 0.0
    %880 = vmatprep.subr.mxu0 0.0
    %881 = vmatpush1.xpose.msra.mxu0 0.0
    %882 = vmatprep.mubr.f32.mxu0 0.0
    %883 = vmatmul.mubr.f32.gmra.mrb[0].mxu0 %v814
    %v884 = vpop.f32.mrb[0].mxu0
    %v885 = vadd.f32 0.0, %v884
    %v886 = vpop.f32.mrb[0].mxu0
    %887 = vdwg.mxu0
    %v888 = vsel %vm443, %v406, 0
    %v890 = vsel %vm443, %v420, 0
    %892 = vmatprep.subr.mxu0 0.0
    %893 = vmatpush1.xpose.msra.mxu0 %v890
    %894 = vmatprep.subr.mxu0 0.0
    %895 = vmatpush1.xpose.msra.mxu0 0.0
    %896 = vmatprep.subr.mxu0 0.0
    %897 = vmatpush1.xpose.msra.mxu0 0.0
    %898 = vmatprep.subr.mxu0 0.0
    %899 = vmatpush1.xpose.msra.mxu0 0.0
    %900 = vmatprep.subr.mxu0 0.0
    %901 = vmatpush1.xpose.msra.mxu0 0.0
    %902 = vmatprep.subr.mxu0 0.0
    %903 = vmatpush1.xpose.msra.mxu0 0.0
    %904 = vmatprep.subr.mxu0 0.0
    %905 = vmatpush1.xpose.msra.mxu0 0.0
    %906 = vmatprep.subr.mxu0 0.0
    %907 = vmatpush1.xpose.msra.mxu0 0.0
    %908 = vmatprep.subr.mxu0 0.0
    %909 = vmatpush1.xpose.msra.mxu0 0.0
    %910 = vmatprep.subr.mxu0 0.0
    %911 = vmatpush1.xpose.msra.mxu0 0.0
    %912 = vmatprep.subr.mxu0 0.0
    %913 = vmatpush1.xpose.msra.mxu0 0.0
    %914 = vmatprep.subr.mxu0 0.0
    %915 = vmatpush1.xpose.msra.mxu0 0.0
    %916 = vmatprep.subr.mxu0 0.0
    %917 = vmatpush1.xpose.msra.mxu0 0.0
    %918 = vmatprep.subr.mxu0 0.0
    %919 = vmatpush1.xpose.msra.mxu0 0.0
    %920 = vmatprep.subr.mxu0 0.0
    %921 = vmatpush1.xpose.msra.mxu0 0.0
    %922 = vmatprep.subr.mxu0 0.0
    %923 = vmatpush1.xpose.msra.mxu0 0.0
    %924 = vmatprep.subr.mxu0 0.0
    %925 = vmatpush1.xpose.msra.mxu0 0.0
    %926 = vmatprep.subr.mxu0 0.0
    %927 = vmatpush1.xpose.msra.mxu0 0.0
    %928 = vmatprep.subr.mxu0 0.0
    %929 = vmatpush1.xpose.msra.mxu0 0.0
    %930 = vmatprep.subr.mxu0 0.0
    %931 = vmatpush1.xpose.msra.mxu0 0.0
    %932 = vmatprep.subr.mxu0 0.0
    %933 = vmatpush1.xpose.msra.mxu0 0.0
    %934 = vmatprep.subr.mxu0 0.0
    %935 = vmatpush1.xpose.msra.mxu0 0.0
    %936 = vmatprep.subr.mxu0 0.0
    %937 = vmatpush1.xpose.msra.mxu0 0.0
    %938 = vmatprep.subr.mxu0 0.0
    %939 = vmatpush1.xpose.msra.mxu0 0.0
    %940 = vmatprep.subr.mxu0 0.0
    %941 = vmatpush1.xpose.msra.mxu0 0.0
    %942 = vmatprep.subr.mxu0 0.0
    %943 = vmatpush1.xpose.msra.mxu0 0.0
    %944 = vmatprep.subr.mxu0 0.0
    %945 = vmatpush1.xpose.msra.mxu0 0.0
    %946 = vmatprep.subr.mxu0 0.0
    %947 = vmatpush1.xpose.msra.mxu0 0.0
    %948 = vmatprep.subr.mxu0 0.0
    %949 = vmatpush1.xpose.msra.mxu0 0.0
    %950 = vmatprep.subr.mxu0 0.0
    %951 = vmatpush1.xpose.msra.mxu0 0.0
    %952 = vmatprep.subr.mxu0 0.0
    %953 = vmatpush1.xpose.msra.mxu0 0.0
    %954 = vmatprep.subr.mxu0 0.0
    %955 = vmatpush1.xpose.msra.mxu0 0.0
    %956 = vmatprep.mubr.f32.mxu0 0.0
    %957 = vmatmul.mubr.f32.gmra.mrb[0].mxu0 %v888
    %v958 = vpop.f32.mrb[0].mxu0
    %v959 = vadd.f32 0.0, %v958
    %v960 = vpop.f32.mrb[0].mxu0
    %961 = vdwg.mxu0
    %v962 = vsel %vm443, %v408, 0
    %v964 = vsel %vm443, %v422, 0
    %966 = vmatprep.subr.mxu0 0.0
    %967 = vmatpush1.xpose.msra.mxu0 %v964
    %968 = vmatprep.subr.mxu0 0.0
    %969 = vmatpush1.xpose.msra.mxu0 0.0
    %970 = vmatprep.subr.mxu0 0.0
    %971 = vmatpush1.xpose.msra.mxu0 0.0
    %972 = vmatprep.subr.mxu0 0.0
    %973 = vmatpush1.xpose.msra.mxu0 0.0
    %974 = vmatprep.subr.mxu0 0.0
    %975 = vmatpush1.xpose.msra.mxu0 0.0
    %976 = vmatprep.subr.mxu0 0.0
    %977 = vmatpush1.xpose.msra.mxu0 0.0
    %978 = vmatprep.subr.mxu0 0.0
    %979 = vmatpush1.xpose.msra.mxu0 0.0
    %980 = vmatprep.subr.mxu0 0.0
    %981 = vmatpush1.xpose.msra.mxu0 0.0
    %982 = vmatprep.subr.mxu0 0.0
    %983 = vmatpush1.xpose.msra.mxu0 0.0
    %984 = vmatprep.subr.mxu0 0.0
    %985 = vmatpush1.xpose.msra.mxu0 0.0
    %986 = vmatprep.subr.mxu0 0.0
    %987 = vmatpush1.xpose.msra.mxu0 0.0
    %988 = vmatprep.subr.mxu0 0.0
    %989 = vmatpush1.xpose.msra.mxu0 0.0
    %990 = vmatprep.subr.mxu0 0.0
    %991 = vmatpush1.xpose.msra.mxu0 0.0
    %992 = vmatprep.subr.mxu0 0.0
    %993 = vmatpush1.xpose.msra.mxu0 0.0
    %994 = vmatprep.subr.mxu0 0.0
    %995 = vmatpush1.xpose.msra.mxu0 0.0
    %996 = vmatprep.subr.mxu0 0.0
    %997 = vmatpush1.xpose.msra.mxu0 0.0
    %998 = vmatprep.subr.mxu0 0.0
    %999 = vmatpush1.xpose.msra.mxu0 0.0
    %1000 = vmatprep.subr.mxu0 0.0
    %1001 = vmatpush1.xpose.msra.mxu0 0.0
    %1002 = vmatprep.subr.mxu0 0.0
    %1003 = vmatpush1.xpose.msra.mxu0 0.0
    %1004 = vmatprep.subr.mxu0 0.0
    %1005 = vmatpush1.xpose.msra.mxu0 0.0
    %1006 = vmatprep.subr.mxu0 0.0
    %1007 = vmatpush1.xpose.msra.mxu0 0.0
    %1008 = vmatprep.subr.mxu0 0.0
    %1009 = vmatpush1.xpose.msra.mxu0 0.0
    %1010 = vmatprep.subr.mxu0 0.0
    %1011 = vmatpush1.xpose.msra.mxu0 0.0
    %1012 = vmatprep.subr.mxu0 0.0
    %1013 = vmatpush1.xpose.msra.mxu0 0.0
    %1014 = vmatprep.subr.mxu0 0.0
    %1015 = vmatpush1.xpose.msra.mxu0 0.0
    %1016 = vmatprep.subr.mxu0 0.0
    %1017 = vmatpush1.xpose.msra.mxu0 0.0
    %1018 = vmatprep.subr.mxu0 0.0
    %1019 = vmatpush1.xpose.msra.mxu0 0.0
    %1020 = vmatprep.subr.mxu0 0.0
    %1021 = vmatpush1.xpose.msra.mxu0 0.0
    %1022 = vmatprep.subr.mxu0 0.0
    %1023 = vmatpush1.xpose.msra.mxu0 0.0
    %1024 = vmatprep.subr.mxu0 0.0
    %1025 = vmatpush1.xpose.msra.mxu0 0.0
    %1026 = vmatprep.subr.mxu0 0.0
    %1027 = vmatpush1.xpose.msra.mxu0 0.0
    %1028 = vmatprep.subr.mxu0 0.0
    %1029 = vmatpush1.xpose.msra.mxu0 0.0
    %1030 = vmatprep.mubr.f32.mxu0 0.0
    %1031 = vmatmul.mubr.f32.gmra.mrb[0].mxu0 %v962
    %v1032 = vpop.f32.mrb[0].mxu0
    %v1033 = vadd.f32 0.0, %v1032
    %v1034 = vpop.f32.mrb[0].mxu0
    %1035 = vdwg.mxu0
    %v1036 = vsel %vm443, %v515, -inf
    %1037 = vmax.xlane.f32.xlu0 %v1036
    %v1038 = vpop.xlane.xlu0 %1037
    %v1039 = vsel %vm443, %v589, -inf
    %1040 = vmax.xlane.f32.xlu0 %v1039
    %v1041 = vpop.xlane.xlu0 %1040
    %v1042 = vsel %vm443, %v663, -inf
    %1043 = vmax.xlane.f32.xlu0 %v1042
    %v1044 = vpop.xlane.xlu0 %1043
    %v1045 = vsel %vm443, %v737, -inf
    %1046 = vmax.xlane.f32.xlu0 %v1045
    %v1047 = vpop.xlane.xlu0 %1046
    %v1048 = vsel %vm443, %v811, -inf
    %1049 = vmax.xlane.f32.xlu0 %v1048
    %v1050 = vpop.xlane.xlu0 %1049
    %v1051 = vsel %vm443, %v885, -inf
    %1052 = vmax.xlane.f32.xlu0 %v1051
    %v1053 = vpop.xlane.xlu0 %1052
    %v1054 = vsel %vm443, %v959, -inf
    %1055 = vmax.xlane.f32.xlu0 %v1054
    %v1056 = vpop.xlane.xlu0 %1055
    %v1057 = vsel %vm443, %v1033, -inf
    %1058 = vmax.xlane.f32.xlu0 %v1057
    %v1059 = vpop.xlane.xlu0 %1058
    %v1060 = vsub.f32 %v515, %v1038
    %v1061 = vsub.f32 %v589, %v1041
    %v1062 = vsub.f32 %v663, %v1044
    %v1063 = vsub.f32 %v737, %v1047
    %v1064 = vsub.f32 %v811, %v1050
    %v1065 = vsub.f32 %v885, %v1053
    %v1066 = vsub.f32 %v959, %v1056
    %v1067 = vsub.f32 %v1033, %v1059
    %v1068 = vmul.f32 %v1060, 1.442695
    %v1069 = vpow.pop %v1068
    %v1070 = vmul.f32 %v1061, 1.442695
    %v1071 = vpow.pop %v1070
    %v1072 = vmul.f32 %v1062, 1.442695
    %v1073 = vpow.pop %v1072
    %v1074 = vmul.f32 %v1063, 1.442695
    %v1075 = vpow.pop %v1074
    %v1076 = vmul.f32 %v1064, 1.442695
    %v1077 = vpow.pop %v1076
    %v1078 = vmul.f32 %v1065, 1.442695
    %v1079 = vpow.pop %v1078
    %v1080 = vmul.f32 %v1066, 1.442695
    %v1081 = vpow.pop %v1080
    %v1082 = vmul.f32 %v1067, 1.442695
    %v1083 = vpow.pop %v1082
    %v1084 = vsel %vm443, %v1069, 0.0
    %1085 = vadd.xlane.f32.xlu0 %v1084
    %v1086 = vpop.xlane.xlu0 %1085
    %v1087 = vsel %vm443, %v1071, 0.0
    %1088 = vadd.xlane.f32.xlu0 %v1087
    %v1089 = vpop.xlane.xlu0 %1088
    %v1090 = vsel %vm443, %v1073, 0.0
    %1091 = vadd.xlane.f32.xlu0 %v1090
    %v1092 = vpop.xlane.xlu0 %1091
    %v1093 = vsel %vm443, %v1075, 0.0
    %1094 = vadd.xlane.f32.xlu0 %v1093
    %v1095 = vpop.xlane.xlu0 %1094
    %v1096 = vsel %vm443, %v1077, 0.0
    %1097 = vadd.xlane.f32.xlu0 %v1096
    %v1098 = vpop.xlane.xlu0 %1097
    %v1099 = vsel %vm443, %v1079, 0.0
    %1100 = vadd.xlane.f32.xlu0 %v1099
    %v1101 = vpop.xlane.xlu0 %1100
    %v1102 = vsel %vm443, %v1081, 0.0
    %1103 = vadd.xlane.f32.xlu0 %v1102
    %v1104 = vpop.xlane.xlu0 %1103
    %v1105 = vsel %vm443, %v1083, 0.0
    %1106 = vadd.xlane.f32.xlu0 %v1105
    %v1107 = vpop.xlane.xlu0 %1106
    %v1108 = vrcp.pop %v1086
    %v1109 = vrcp.pop %v1089
    %v1110 = vrcp.pop %v1092
    %v1111 = vrcp.pop %v1095
    %v1112 = vrcp.pop %v1098
    %v1113 = vrcp.pop %v1101
    %v1114 = vrcp.pop %v1104
    %v1115 = vrcp.pop %v1107
    %v1116 = vmul.f32 %v1086, %v1108
    %v1117 = vmul.f32 %v1089, %v1109
    %v1118 = vmul.f32 %v1092, %v1110
    %v1119 = vmul.f32 %v1095, %v1111
    %v1120 = vmul.f32 %v1098, %v1112
    %v1121 = vmul.f32 %v1101, %v1113
    %v1122 = vmul.f32 %v1104, %v1114
    %v1123 = vmul.f32 %v1107, %v1115
    %v1124 = vsub.f32 2.0, %v1116
    %v1125 = vsub.f32 2.0, %v1117
    %v1126 = vsub.f32 2.0, %v1118
    %v1127 = vsub.f32 2.0, %v1119
    %v1128 = vsub.f32 2.0, %v1120
    %v1129 = vsub.f32 2.0, %v1121
    %v1130 = vsub.f32 2.0, %v1122
    %v1131 = vsub.f32 2.0, %v1123
    %v1132 = vmul.f32 %v1108, %v1124
    %v1133 = vmul.f32 %v1109, %v1125
    %v1134 = vmul.f32 %v1110, %v1126
    %v1135 = vmul.f32 %v1111, %v1127
    %v1136 = vmul.f32 %v1112, %v1128
    %v1137 = vmul.f32 %v1113, %v1129
    %v1138 = vmul.f32 %v1114, %v1130
    %v1139 = vmul.f32 %v1115, %v1131
    %v1140 = vmul.f32 %v1069, %v1132
    %v1141 = vmul.f32 %v1071, %v1133
    %v1142 = vmul.f32 %v1073, %v1134
    %v1143 = vmul.f32 %v1075, %v1135
    %v1144 = vmul.f32 %v1077, %v1136
    %v1145 = vmul.f32 %v1079, %v1137
    %v1146 = vmul.f32 %v1081, %v1138
    %v1147 = vmul.f32 %v1083, %v1139
    %1148 = vst.msk [vmem:[#allocation13] sm:$0xff] %vm443, %v1140
    %1149 = vst.msk [vmem:[#allocation13 + $0x8] sm:$0xff] %vm443, %v1141
    %1150 = vst.msk [vmem:[#allocation13 + $0x10] sm:$0xff] %vm443, %v1142
    %1151 = vst.msk [vmem:[#allocation13 + $0x18] sm:$0xff] %vm443, %v1143
    %1152 = vst.msk [vmem:[#allocation13 + $0x20] sm:$0xff] %vm443, %v1144
    %1153 = vst.msk [vmem:[#allocation13 + $0x28] sm:$0xff] %vm443, %v1145
    %1154 = vst.msk [vmem:[#allocation13 + $0x30] sm:$0xff] %vm443, %v1146
    %1155 = vst.msk [vmem:[#allocation13 + $0x38] sm:$0xff] %vm443, %v1147
    %v1157 = vsel %vm443, %v1140, 0
    %1159 = vmatprep.subr.mxu0 0.0
    %1160 = vmatpush1.msra.mxu0 %v387
    %1161 = vmatprep.subr.mxu0 0.0
    %1162 = vmatpush1.msra.mxu0 0.0
    %1163 = vmatprep.subr.mxu0 0.0
    %1164 = vmatpush1.msra.mxu0 0.0
    %1165 = vmatprep.subr.mxu0 0.0
    %1166 = vmatpush1.msra.mxu0 0.0
    %1167 = vmatprep.subr.mxu0 0.0
    %1168 = vmatpush1.msra.mxu0 0.0
    %1169 = vmatprep.subr.mxu0 0.0
    %1170 = vmatpush1.msra.mxu0 0.0
    %1171 = vmatprep.subr.mxu0 0.0
    %1172 = vmatpush1.msra.mxu0 0.0
    %1173 = vmatprep.subr.mxu0 0.0
    %1174 = vmatpush1.msra.mxu0 0.0
    %1175 = vmatprep.subr.mxu0 0.0
    %1176 = vmatpush1.msra.mxu0 0.0
    %1177 = vmatprep.subr.mxu0 0.0
    %1178 = vmatpush1.msra.mxu0 0.0
    %1179 = vmatprep.subr.mxu0 0.0
    %1180 = vmatpush1.msra.mxu0 0.0
    %1181 = vmatprep.subr.mxu0 0.0
    %1182 = vmatpush1.msra.mxu0 0.0
    %1183 = vmatprep.subr.mxu0 0.0
    %1184 = vmatpush1.msra.mxu0 0.0
    %1185 = vmatprep.subr.mxu0 0.0
    %1186 = vmatpush1.msra.mxu0 0.0
    %1187 = vmatprep.subr.mxu0 0.0
    %1188 = vmatpush1.msra.mxu0 0.0
    %1189 = vmatprep.subr.mxu0 0.0
    %1190 = vmatpush1.msra.mxu0 0.0
    %1191 = vmatprep.subr.mxu0 0.0
    %1192 = vmatpush1.msra.mxu0 0.0
    %1193 = vmatprep.subr.mxu0 0.0
    %1194 = vmatpush1.msra.mxu0 0.0
    %1195 = vmatprep.subr.mxu0 0.0
    %1196 = vmatpush1.msra.mxu0 0.0
    %1197 = vmatprep.subr.mxu0 0.0
    %1198 = vmatpush1.msra.mxu0 0.0
    %1199 = vmatprep.subr.mxu0 0.0
    %1200 = vmatpush1.msra.mxu0 0.0
    %1201 = vmatprep.subr.mxu0 0.0
    %1202 = vmatpush1.msra.mxu0 0.0
    %1203 = vmatprep.subr.mxu0 0.0
    %1204 = vmatpush1.msra.mxu0 0.0
    %1205 = vmatprep.subr.mxu0 0.0
    %1206 = vmatpush1.msra.mxu0 0.0
    %1207 = vmatprep.subr.mxu0 0.0
    %1208 = vmatpush1.msra.mxu0 0.0
    %1209 = vmatprep.subr.mxu0 0.0
    %1210 = vmatpush1.msra.mxu0 0.0
    %1211 = vmatprep.subr.mxu0 0.0
    %1212 = vmatpush1.msra.mxu0 0.0
    %1213 = vmatprep.subr.mxu0 0.0
    %1214 = vmatpush1.msra.mxu0 0.0
    %1215 = vmatprep.subr.mxu0 0.0
    %1216 = vmatpush1.msra.mxu0 0.0
    %1217 = vmatprep.subr.mxu0 0.0
    %1218 = vmatpush1.msra.mxu0 0.0
    %1219 = vmatprep.subr.mxu0 0.0
    %1220 = vmatpush1.msra.mxu0 0.0
    %1221 = vmatprep.subr.mxu0 0.0
    %1222 = vmatpush1.msra.mxu0 0.0
    %1223 = vmatprep.mubr.f32.mxu0 0.0
    %1224 = vmatmul.mubr.f32.gmra.mrb[0].mxu0 %v1157
    %v1225 = vpop.f32.mrb[0].mxu0
    %v1226 = vadd.f32 0.0, %v1225
    %v1227 = vpop.f32.mrb[0].mxu0
    %1228 = vdwg.mxu0
    %v1230 = vsel %vm443, %v1141, 0
    %1232 = vmatprep.subr.mxu0 0.0
    %1233 = vmatpush1.msra.mxu0 %v425
    %1234 = vmatprep.subr.mxu0 0.0
    %1235 = vmatpush1.msra.mxu0 0.0
    %1236 = vmatprep.subr.mxu0 0.0
    %1237 = vmatpush1.msra.mxu0 0.0
    %1238 = vmatprep.subr.mxu0 0.0
    %1239 = vmatpush1.msra.mxu0 0.0
    %1240 = vmatprep.subr.mxu0 0.0
    %1241 = vmatpush1.msra.mxu0 0.0
    %1242 = vmatprep.subr.mxu0 0.0
    %1243 = vmatpush1.msra.mxu0 0.0
    %1244 = vmatprep.subr.mxu0 0.0
    %1245 = vmatpush1.msra.mxu0 0.0
    %1246 = vmatprep.subr.mxu0 0.0
    %1247 = vmatpush1.msra.mxu0 0.0
    %1248 = vmatprep.subr.mxu0 0.0
    %1249 = vmatpush1.msra.mxu0 0.0
    %1250 = vmatprep.subr.mxu0 0.0
    %1251 = vmatpush1.msra.mxu0 0.0
    %1252 = vmatprep.subr.mxu0 0.0
    %1253 = vmatpush1.msra.mxu0 0.0
    %1254 = vmatprep.subr.mxu0 0.0
    %1255 = vmatpush1.msra.mxu0 0.0
    %1256 = vmatprep.subr.mxu0 0.0
    %1257 = vmatpush1.msra.mxu0 0.0
    %1258 = vmatprep.subr.mxu0 0.0
    %1259 = vmatpush1.msra.mxu0 0.0
    %1260 = vmatprep.subr.mxu0 0.0
    %1261 = vmatpush1.msra.mxu0 0.0
    %1262 = vmatprep.subr.mxu0 0.0
    %1263 = vmatpush1.msra.mxu0 0.0
    %1264 = vmatprep.subr.mxu0 0.0
    %1265 = vmatpush1.msra.mxu0 0.0
    %1266 = vmatprep.subr.mxu0 0.0
    %1267 = vmatpush1.msra.mxu0 0.0
    %1268 = vmatprep.subr.mxu0 0.0
    %1269 = vmatpush1.msra.mxu0 0.0
    %1270 = vmatprep.subr.mxu0 0.0
    %1271 = vmatpush1.msra.mxu0 0.0
    %1272 = vmatprep.subr.mxu0 0.0
    %1273 = vmatpush1.msra.mxu0 0.0
    %1274 = vmatprep.subr.mxu0 0.0
    %1275 = vmatpush1.msra.mxu0 0.0
    %1276 = vmatprep.subr.mxu0 0.0
    %1277 = vmatpush1.msra.mxu0 0.0
    %1278 = vmatprep.subr.mxu0 0.0
    %1279 = vmatpush1.msra.mxu0 0.0
    %1280 = vmatprep.subr.mxu0 0.0
    %1281 = vmatpush1.msra.mxu0 0.0
    %1282 = vmatprep.subr.mxu0 0.0
    %1283 = vmatpush1.msra.mxu0 0.0
    %1284 = vmatprep.subr.mxu0 0.0
    %1285 = vmatpush1.msra.mxu0 0.0
    %1286 = vmatprep.subr.mxu0 0.0
    %1287 = vmatpush1.msra.mxu0 0.0
    %1288 = vmatprep.subr.mxu0 0.0
    %1289 = vmatpush1.msra.mxu0 0.0
    %1290 = vmatprep.subr.mxu0 0.0
    %1291 = vmatpush1.msra.mxu0 0.0
    %1292 = vmatprep.subr.mxu0 0.0
    %1293 = vmatpush1.msra.mxu0 0.0
    %1294 = vmatprep.subr.mxu0 0.0
    %1295 = vmatpush1.msra.mxu0 0.0
    %1296 = vmatprep.mubr.f32.mxu0 0.0
    %1297 = vmatmul.mubr.f32.gmra.mrb[0].mxu0 %v1230
    %v1298 = vpop.f32.mrb[0].mxu0
    %v1299 = vadd.f32 0.0, %v1298
    %v1300 = vpop.f32.mrb[0].mxu0
    %1301 = vdwg.mxu0
    %v1303 = vsel %vm443, %v1142, 0
    %1305 = vmatprep.subr.mxu0 0.0
    %1306 = vmatpush1.msra.mxu0 %v428
    %1307 = vmatprep.subr.mxu0 0.0
    %1308 = vmatpush1.msra.mxu0 0.0
    %1309 = vmatprep.subr.mxu0 0.0
    %1310 = vmatpush1.msra.mxu0 0.0
    %1311 = vmatprep.subr.mxu0 0.0
    %1312 = vmatpush1.msra.mxu0 0.0
    %1313 = vmatprep.subr.mxu0 0.0
    %1314 = vmatpush1.msra.mxu0 0.0
    %1315 = vmatprep.subr.mxu0 0.0
    %1316 = vmatpush1.msra.mxu0 0.0
    %1317 = vmatprep.subr.mxu0 0.0
    %1318 = vmatpush1.msra.mxu0 0.0
    %1319 = vmatprep.subr.mxu0 0.0
    %1320 = vmatpush1.msra.mxu0 0.0
    %1321 = vmatprep.subr.mxu0 0.0
    %1322 = vmatpush1.msra.mxu0 0.0
    %1323 = vmatprep.subr.mxu0 0.0
    %1324 = vmatpush1.msra.mxu0 0.0
    %1325 = vmatprep.subr.mxu0 0.0
    %1326 = vmatpush1.msra.mxu0 0.0
    %1327 = vmatprep.subr.mxu0 0.0
    %1328 = vmatpush1.msra.mxu0 0.0
    %1329 = vmatprep.subr.mxu0 0.0
    %1330 = vmatpush1.msra.mxu0 0.0
    %1331 = vmatprep.subr.mxu0 0.0
    %1332 = vmatpush1.msra.mxu0 0.0
    %1333 = vmatprep.subr.mxu0 0.0
    %1334 = vmatpush1.msra.mxu0 0.0
    %1335 = vmatprep.subr.mxu0 0.0
    %1336 = vmatpush1.msra.mxu0 0.0
    %1337 = vmatprep.subr.mxu0 0.0
    %1338 = vmatpush1.msra.mxu0 0.0
    %1339 = vmatprep.subr.mxu0 0.0
    %1340 = vmatpush1.msra.mxu0 0.0
    %1341 = vmatprep.subr.mxu0 0.0
    %1342 = vmatpush1.msra.mxu0 0.0
    %1343 = vmatprep.subr.mxu0 0.0
    %1344 = vmatpush1.msra.mxu0 0.0
    %1345 = vmatprep.subr.mxu0 0.0
    %1346 = vmatpush1.msra.mxu0 0.0
    %1347 = vmatprep.subr.mxu0 0.0
    %1348 = vmatpush1.msra.mxu0 0.0
    %1349 = vmatprep.subr.mxu0 0.0
    %1350 = vmatpush1.msra.mxu0 0.0
    %1351 = vmatprep.subr.mxu0 0.0
    %1352 = vmatpush1.msra.mxu0 0.0
    %1353 = vmatprep.subr.mxu0 0.0
    %1354 = vmatpush1.msra.mxu0 0.0
    %1355 = vmatprep.subr.mxu0 0.0
    %1356 = vmatpush1.msra.mxu0 0.0
    %1357 = vmatprep.subr.mxu0 0.0
    %1358 = vmatpush1.msra.mxu0 0.0
    %1359 = vmatprep.subr.mxu0 0.0
    %1360 = vmatpush1.msra.mxu0 0.0
    %1361 = vmatprep.subr.mxu0 0.0
    %1362 = vmatpush1.msra.mxu0 0.0
    %1363 = vmatprep.subr.mxu0 0.0
    %1364 = vmatpush1.msra.mxu0 0.0
    %1365 = vmatprep.subr.mxu0 0.0
    %1366 = vmatpush1.msra.mxu0 0.0
    %1367 = vmatprep.subr.mxu0 0.0
    %1368 = vmatpush1.msra.mxu0 0.0
    %1369 = vmatprep.mubr.f32.mxu0 0.0
    %1370 = vmatmul.mubr.f32.gmra.mrb[0].mxu0 %v1303
    %v1371 = vpop.f32.mrb[0].mxu0
    %v1372 = vadd.f32 0.0, %v1371
    %v1373 = vpop.f32.mrb[0].mxu0
    %1374 = vdwg.mxu0
    %v1376 = vsel %vm443, %v1143, 0
    %1378 = vmatprep.subr.mxu0 0.0
    %1379 = vmatpush1.msra.mxu0 %v431
    %1380 = vmatprep.subr.mxu0 0.0
    %1381 = vmatpush1.msra.mxu0 0.0
    %1382 = vmatprep.subr.mxu0 0.0
    %1383 = vmatpush1.msra.mxu0 0.0
    %1384 = vmatprep.subr.mxu0 0.0
    %1385 = vmatpush1.msra.mxu0 0.0
    %1386 = vmatprep.subr.mxu0 0.0
    %1387 = vmatpush1.msra.mxu0 0.0
    %1388 = vmatprep.subr.mxu0 0.0
    %1389 = vmatpush1.msra.mxu0 0.0
    %1390 = vmatprep.subr.mxu0 0.0
    %1391 = vmatpush1.msra.mxu0 0.0
    %1392 = vmatprep.subr.mxu0 0.0
    %1393 = vmatpush1.msra.mxu0 0.0
    %1394 = vmatprep.subr.mxu0 0.0
    %1395 = vmatpush1.msra.mxu0 0.0
    %1396 = vmatprep.subr.mxu0 0.0
    %1397 = vmatpush1.msra.mxu0 0.0
    %1398 = vmatprep.subr.mxu0 0.0
    %1399 = vmatpush1.msra.mxu0 0.0
    %1400 = vmatprep.subr.mxu0 0.0
    %1401 = vmatpush1.msra.mxu0 0.0
    %1402 = vmatprep.subr.mxu0 0.0
    %1403 = vmatpush1.msra.mxu0 0.0
    %1404 = vmatprep.subr.mxu0 0.0
    %1405 = vmatpush1.msra.mxu0 0.0
    %1406 = vmatprep.subr.mxu0 0.0
    %1407 = vmatpush1.msra.mxu0 0.0
    %1408 = vmatprep.subr.mxu0 0.0
    %1409 = vmatpush1.msra.mxu0 0.0
    %1410 = vmatprep.subr.mxu0 0.0
    %1411 = vmatpush1.msra.mxu0 0.0
    %1412 = vmatprep.subr.mxu0 0.0
    %1413 = vmatpush1.msra.mxu0 0.0
    %1414 = vmatprep.subr.mxu0 0.0
    %1415 = vmatpush1.msra.mxu0 0.0
    %1416 = vmatprep.subr.mxu0 0.0
    %1417 = vmatpush1.msra.mxu0 0.0
    %1418 = vmatprep.subr.mxu0 0.0
    %1419 = vmatpush1.msra.mxu0 0.0
    %1420 = vmatprep.subr.mxu0 0.0
    %1421 = vmatpush1.msra.mxu0 0.0
    %1422 = vmatprep.subr.mxu0 0.0
    %1423 = vmatpush1.msra.mxu0 0.0
    %1424 = vmatprep.subr.mxu0 0.0
    %1425 = vmatpush1.msra.mxu0 0.0
    %1426 = vmatprep.subr.mxu0 0.0
    %1427 = vmatpush1.msra.mxu0 0.0
    %1428 = vmatprep.subr.mxu0 0.0
    %1429 = vmatpush1.msra.mxu0 0.0
    %1430 = vmatprep.subr.mxu0 0.0
    %1431 = vmatpush1.msra.mxu0 0.0
    %1432 = vmatprep.subr.mxu0 0.0
    %1433 = vmatpush1.msra.mxu0 0.0
    %1434 = vmatprep.subr.mxu0 0.0
    %1435 = vmatpush1.msra.mxu0 0.0
    %1436 = vmatprep.subr.mxu0 0.0
    %1437 = vmatpush1.msra.mxu0 0.0
    %1438 = vmatprep.subr.mxu0 0.0
    %1439 = vmatpush1.msra.mxu0 0.0
    %1440 = vmatprep.subr.mxu0 0.0
    %1441 = vmatpush1.msra.mxu0 0.0
    %1442 = vmatprep.mubr.f32.mxu0 0.0
    %1443 = vmatmul.mubr.f32.gmra.mrb[0].mxu0 %v1376
    %v1444 = vpop.f32.mrb[0].mxu0
    %v1445 = vadd.f32 0.0, %v1444
    %v1446 = vpop.f32.mrb[0].mxu0
    %1447 = vdwg.mxu0
    %v1449 = vsel %vm443, %v1144, 0
    %1451 = vmatprep.subr.mxu0 0.0
    %1452 = vmatpush1.msra.mxu0 %v392
    %1453 = vmatprep.subr.mxu0 0.0
    %1454 = vmatpush1.msra.mxu0 0.0
    %1455 = vmatprep.subr.mxu0 0.0
    %1456 = vmatpush1.msra.mxu0 0.0
    %1457 = vmatprep.subr.mxu0 0.0
    %1458 = vmatpush1.msra.mxu0 0.0
    %1459 = vmatprep.subr.mxu0 0.0
    %1460 = vmatpush1.msra.mxu0 0.0
    %1461 = vmatprep.subr.mxu0 0.0
    %1462 = vmatpush1.msra.mxu0 0.0
    %1463 = vmatprep.subr.mxu0 0.0
    %1464 = vmatpush1.msra.mxu0 0.0
    %1465 = vmatprep.subr.mxu0 0.0
    %1466 = vmatpush1.msra.mxu0 0.0
    %1467 = vmatprep.subr.mxu0 0.0
    %1468 = vmatpush1.msra.mxu0 0.0
    %1469 = vmatprep.subr.mxu0 0.0
    %1470 = vmatpush1.msra.mxu0 0.0
    %1471 = vmatprep.subr.mxu0 0.0
    %1472 = vmatpush1.msra.mxu0 0.0
    %1473 = vmatprep.subr.mxu0 0.0
    %1474 = vmatpush1.msra.mxu0 0.0
    %1475 = vmatprep.subr.mxu0 0.0
    %1476 = vmatpush1.msra.mxu0 0.0
    %1477 = vmatprep.subr.mxu0 0.0
    %1478 = vmatpush1.msra.mxu0 0.0
    %1479 = vmatprep.subr.mxu0 0.0
    %1480 = vmatpush1.msra.mxu0 0.0
    %1481 = vmatprep.subr.mxu0 0.0
    %1482 = vmatpush1.msra.mxu0 0.0
    %1483 = vmatprep.subr.mxu0 0.0
    %1484 = vmatpush1.msra.mxu0 0.0
    %1485 = vmatprep.subr.mxu0 0.0
    %1486 = vmatpush1.msra.mxu0 0.0
    %1487 = vmatprep.subr.mxu0 0.0
    %1488 = vmatpush1.msra.mxu0 0.0
    %1489 = vmatprep.subr.mxu0 0.0
    %1490 = vmatpush1.msra.mxu0 0.0
    %1491 = vmatprep.subr.mxu0 0.0
    %1492 = vmatpush1.msra.mxu0 0.0
    %1493 = vmatprep.subr.mxu0 0.0
    %1494 = vmatpush1.msra.mxu0 0.0
    %1495 = vmatprep.subr.mxu0 0.0
    %1496 = vmatpush1.msra.mxu0 0.0
    %1497 = vmatprep.subr.mxu0 0.0
    %1498 = vmatpush1.msra.mxu0 0.0
    %1499 = vmatprep.subr.mxu0 0.0
    %1500 = vmatpush1.msra.mxu0 0.0
    %1501 = vmatprep.subr.mxu0 0.0
    %1502 = vmatpush1.msra.mxu0 0.0
    %1503 = vmatprep.subr.mxu0 0.0
    %1504 = vmatpush1.msra.mxu0 0.0
    %1505 = vmatprep.subr.mxu0 0.0
    %1506 = vmatpush1.msra.mxu0 0.0
    %1507 = vmatprep.subr.mxu0 0.0
    %1508 = vmatpush1.msra.mxu0 0.0
    %1509 = vmatprep.subr.mxu0 0.0
    %1510 = vmatpush1.msra.mxu0 0.0
    %1511 = vmatprep.subr.mxu0 0.0
    %1512 = vmatpush1.msra.mxu0 0.0
    %1513 = vmatprep.subr.mxu0 0.0
    %1514 = vmatpush1.msra.mxu0 0.0
    %1515 = vmatprep.mubr.f32.mxu0 0.0
    %1516 = vmatmul.mubr.f32.gmra.mrb[0].mxu0 %v1449
    %v1517 = vpop.f32.mrb[0].mxu0
    %v1518 = vadd.f32 0.0, %v1517
    %v1519 = vpop.f32.mrb[0].mxu0
    %1520 = vdwg.mxu0
    %v1522 = vsel %vm443, %v1145, 0
    %1524 = vmatprep.subr.mxu0 0.0
    %1525 = vmatpush1.msra.mxu0 %v435
    %1526 = vmatprep.subr.mxu0 0.0
    %1527 = vmatpush1.msra.mxu0 0.0
    %1528 = vmatprep.subr.mxu0 0.0
    %1529 = vmatpush1.msra.mxu0 0.0
    %1530 = vmatprep.subr.mxu0 0.0
    %1531 = vmatpush1.msra.mxu0 0.0
    %1532 = vmatprep.subr.mxu0 0.0
    %1533 = vmatpush1.msra.mxu0 0.0
    %1534 = vmatprep.subr.mxu0 0.0
    %1535 = vmatpush1.msra.mxu0 0.0
    %1536 = vmatprep.subr.mxu0 0.0
    %1537 = vmatpush1.msra.mxu0 0.0
    %1538 = vmatprep.subr.mxu0 0.0
    %1539 = vmatpush1.msra.mxu0 0.0
    %1540 = vmatprep.subr.mxu0 0.0
    %1541 = vmatpush1.msra.mxu0 0.0
    %1542 = vmatprep.subr.mxu0 0.0
    %1543 = vmatpush1.msra.mxu0 0.0
    %1544 = vmatprep.subr.mxu0 0.0
    %1545 = vmatpush1.msra.mxu0 0.0
    %1546 = vmatprep.subr.mxu0 0.0
    %1547 = vmatpush1.msra.mxu0 0.0
    %1548 = vmatprep.subr.mxu0 0.0
    %1549 = vmatpush1.msra.mxu0 0.0
    %1550 = vmatprep.subr.mxu0 0.0
    %1551 = vmatpush1.msra.mxu0 0.0
    %1552 = vmatprep.subr.mxu0 0.0
    %1553 = vmatpush1.msra.mxu0 0.0
    %1554 = vmatprep.subr.mxu0 0.0
    %1555 = vmatpush1.msra.mxu0 0.0
    %1556 = vmatprep.subr.mxu0 0.0
    %1557 = vmatpush1.msra.mxu0 0.0
    %1558 = vmatprep.subr.mxu0 0.0
    %1559 = vmatpush1.msra.mxu0 0.0
    %1560 = vmatprep.subr.mxu0 0.0
    %1561 = vmatpush1.msra.mxu0 0.0
    %1562 = vmatprep.subr.mxu0 0.0
    %1563 = vmatpush1.msra.mxu0 0.0
    %1564 = vmatprep.subr.mxu0 0.0
    %1565 = vmatpush1.msra.mxu0 0.0
    %1566 = vmatprep.subr.mxu0 0.0
    %1567 = vmatpush1.msra.mxu0 0.0
    %1568 = vmatprep.subr.mxu0 0.0
    %1569 = vmatpush1.msra.mxu0 0.0
    %1570 = vmatprep.subr.mxu0 0.0
    %1571 = vmatpush1.msra.mxu0 0.0
    %1572 = vmatprep.subr.mxu0 0.0
    %1573 = vmatpush1.msra.mxu0 0.0
    %1574 = vmatprep.subr.mxu0 0.0
    %1575 = vmatpush1.msra.mxu0 0.0
    %1576 = vmatprep.subr.mxu0 0.0
    %1577 = vmatpush1.msra.mxu0 0.0
    %1578 = vmatprep.subr.mxu0 0.0
    %1579 = vmatpush1.msra.mxu0 0.0
    %1580 = vmatprep.subr.mxu0 0.0
    %1581 = vmatpush1.msra.mxu0 0.0
    %1582 = vmatprep.subr.mxu0 0.0
    %1583 = vmatpush1.msra.mxu0 0.0
    %1584 = vmatprep.subr.mxu0 0.0
    %1585 = vmatpush1.msra.mxu0 0.0
    %1586 = vmatprep.subr.mxu0 0.0
    %1587 = vmatpush1.msra.mxu0 0.0
    %1588 = vmatprep.mubr.f32.mxu0 0.0
    %1589 = vmatmul.mubr.f32.gmra.mrb[0].mxu0 %v1522
    %v1590 = vpop.f32.mrb[0].mxu0
    %v1591 = vadd.f32 0.0, %v1590
    %v1592 = vpop.f32.mrb[0].mxu0
    %1593 = vdwg.mxu0
    %v1595 = vsel %vm443, %v1146, 0
    %1597 = vmatprep.subr.mxu0 0.0
    %1598 = vmatpush1.msra.mxu0 %v438
    %1599 = vmatprep.subr.mxu0 0.0
    %1600 = vmatpush1.msra.mxu0 0.0
    %1601 = vmatprep.subr.mxu0 0.0
    %1602 = vmatpush1.msra.mxu0 0.0
    %1603 = vmatprep.subr.mxu0 0.0
    %1604 = vmatpush1.msra.mxu0 0.0
    %1605 = vmatprep.subr.mxu0 0.0
    %1606 = vmatpush1.msra.mxu0 0.0
    %1607 = vmatprep.subr.mxu0 0.0
    %1608 = vmatpush1.msra.mxu0 0.0
    %1609 = vmatprep.subr.mxu0 0.0
    %1610 = vmatpush1.msra.mxu0 0.0
    %1611 = vmatprep.subr.mxu0 0.0
    %1612 = vmatpush1.msra.mxu0 0.0
    %1613 = vmatprep.subr.mxu0 0.0
    %1614 = vmatpush1.msra.mxu0 0.0
    %1615 = vmatprep.subr.mxu0 0.0
    %1616 = vmatpush1.msra.mxu0 0.0
    %1617 = vmatprep.subr.mxu0 0.0
    %1618 = vmatpush1.msra.mxu0 0.0
    %1619 = vmatprep.subr.mxu0 0.0
    %1620 = vmatpush1.msra.mxu0 0.0
    %1621 = vmatprep.subr.mxu0 0.0
    %1622 = vmatpush1.msra.mxu0 0.0
    %1623 = vmatprep.subr.mxu0 0.0
    %1624 = vmatpush1.msra.mxu0 0.0
    %1625 = vmatprep.subr.mxu0 0.0
    %1626 = vmatpush1.msra.mxu0 0.0
    %1627 = vmatprep.subr.mxu0 0.0
    %1628 = vmatpush1.msra.mxu0 0.0
    %1629 = vmatprep.subr.mxu0 0.0
    %1630 = vmatpush1.msra.mxu0 0.0
    %1631 = vmatprep.subr.mxu0 0.0
    %1632 = vmatpush1.msra.mxu0 0.0
    %1633 = vmatprep.subr.mxu0 0.0
    %1634 = vmatpush1.msra.mxu0 0.0
    %1635 = vmatprep.subr.mxu0 0.0
    %1636 = vmatpush1.msra.mxu0 0.0
    %1637 = vmatprep.subr.mxu0 0.0
    %1638 = vmatpush1.msra.mxu0 0.0
    %1639 = vmatprep.subr.mxu0 0.0
    %1640 = vmatpush1.msra.mxu0 0.0
    %1641 = vmatprep.subr.mxu0 0.0
    %1642 = vmatpush1.msra.mxu0 0.0
    %1643 = vmatprep.subr.mxu0 0.0
    %1644 = vmatpush1.msra.mxu0 0.0
    %1645 = vmatprep.subr.mxu0 0.0
    %1646 = vmatpush1.msra.mxu0 0.0
    %1647 = vmatprep.subr.mxu0 0.0
    %1648 = vmatpush1.msra.mxu0 0.0
    %1649 = vmatprep.subr.mxu0 0.0
    %1650 = vmatpush1.msra.mxu0 0.0
    %1651 = vmatprep.subr.mxu0 0.0
    %1652 = vmatpush1.msra.mxu0 0.0
    %1653 = vmatprep.subr.mxu0 0.0
    %1654 = vmatpush1.msra.mxu0 0.0
    %1655 = vmatprep.subr.mxu0 0.0
    %1656 = vmatpush1.msra.mxu0 0.0
    %1657 = vmatprep.subr.mxu0 0.0
    %1658 = vmatpush1.msra.mxu0 0.0
    %1659 = vmatprep.subr.mxu0 0.0
    %1660 = vmatpush1.msra.mxu0 0.0
    %1661 = vmatprep.mubr.f32.mxu0 0.0
    %1662 = vmatmul.mubr.f32.gmra.mrb[0].mxu0 %v1595
    %v1663 = vpop.f32.mrb[0].mxu0
    %v1664 = vadd.f32 0.0, %v1663
    %v1665 = vpop.f32.mrb[0].mxu0
    %1666 = vdwg.mxu0
    %v1668 = vsel %vm443, %v1147, 0
    %1670 = vmatprep.subr.mxu0 0.0
    %1671 = vmatpush1.msra.mxu0 %v441
    %1672 = vmatprep.subr.mxu0 0.0
    %1673 = vmatpush1.msra.mxu0 0.0
    %1674 = vmatprep.subr.mxu0 0.0
    %1675 = vmatpush1.msra.mxu0 0.0
    %1676 = vmatprep.subr.mxu0 0.0
    %1677 = vmatpush1.msra.mxu0 0.0
    %1678 = vmatprep.subr.mxu0 0.0
    %1679 = vmatpush1.msra.mxu0 0.0
    %1680 = vmatprep.subr.mxu0 0.0
    %1681 = vmatpush1.msra.mxu0 0.0
    %1682 = vmatprep.subr.mxu0 0.0
    %1683 = vmatpush1.msra.mxu0 0.0
    %1684 = vmatprep.subr.mxu0 0.0
    %1685 = vmatpush1.msra.mxu0 0.0
    %1686 = vmatprep.subr.mxu0 0.0
    %1687 = vmatpush1.msra.mxu0 0.0
    %1688 = vmatprep.subr.mxu0 0.0
    %1689 = vmatpush1.msra.mxu0 0.0
    %1690 = vmatprep.subr.mxu0 0.0
    %1691 = vmatpush1.msra.mxu0 0.0
    %1692 = vmatprep.subr.mxu0 0.0
    %1693 = vmatpush1.msra.mxu0 0.0
    %1694 = vmatprep.subr.mxu0 0.0
    %1695 = vmatpush1.msra.mxu0 0.0
    %1696 = vmatprep.subr.mxu0 0.0
    %1697 = vmatpush1.msra.mxu0 0.0
    %1698 = vmatprep.subr.mxu0 0.0
    %1699 = vmatpush1.msra.mxu0 0.0
    %1700 = vmatprep.subr.mxu0 0.0
    %1701 = vmatpush1.msra.mxu0 0.0
    %1702 = vmatprep.subr.mxu0 0.0
    %1703 = vmatpush1.msra.mxu0 0.0
    %1704 = vmatprep.subr.mxu0 0.0
    %1705 = vmatpush1.msra.mxu0 0.0
    %1706 = vmatprep.subr.mxu0 0.0
    %1707 = vmatpush1.msra.mxu0 0.0
    %1708 = vmatprep.subr.mxu0 0.0
    %1709 = vmatpush1.msra.mxu0 0.0
    %1710 = vmatprep.subr.mxu0 0.0
    %1711 = vmatpush1.msra.mxu0 0.0
    %1712 = vmatprep.subr.mxu0 0.0
    %1713 = vmatpush1.msra.mxu0 0.0
    %1714 = vmatprep.subr.mxu0 0.0
    %1715 = vmatpush1.msra.mxu0 0.0
    %1716 = vmatprep.subr.mxu0 0.0
    %1717 = vmatpush1.msra.mxu0 0.0
    %1718 = vmatprep.subr.mxu0 0.0
    %1719 = vmatpush1.msra.mxu0 0.0
    %1720 = vmatprep.subr.mxu0 0.0
    %1721 = vmatpush1.msra.mxu0 0.0
    %1722 = vmatprep.subr.mxu0 0.0
    %1723 = vmatpush1.msra.mxu0 0.0
    %1724 = vmatprep.subr.mxu0 0.0
    %1725 = vmatpush1.msra.mxu0 0.0
    %1726 = vmatprep.subr.mxu0 0.0
    %1727 = vmatpush1.msra.mxu0 0.0
    %1728 = vmatprep.subr.mxu0 0.0
    %1729 = vmatpush1.msra.mxu0 0.0
    %1730 = vmatprep.subr.mxu0 0.0
    %1731 = vmatpush1.msra.mxu0 0.0
    %1732 = vmatprep.subr.mxu0 0.0
    %1733 = vmatpush1.msra.mxu0 0.0
    %1734 = vmatprep.mubr.f32.mxu0 0.0
    %1735 = vmatmul.mubr.f32.gmra.mrb[0].mxu0 %v1668
    %v1736 = vpop.f32.mrb[0].mxu0
    %v1737 = vadd.f32 0.0, %v1736
    %v1738 = vpop.f32.mrb[0].mxu0
    %1739 = vdwg.mxu0
    %1740 = vst.msk [vmem:[#allocation2] sm:$0xff] %vm443, %v1226
    %1742 = vrot.lane.b32.xlu0 %v1299, 8
    %v1743 = vpop.permute.xlu0 %1742
    %vm1745 = vcmask 130112
    %1746 = vst.msk [vmem:[#allocation2] sm:$0xff] %vm1745, %v1743
    %1748 = vrot.lane.b32.xlu0 %v1372, 16
    %v1749 = vpop.permute.xlu0 %1748
    %vm1751 = vcmask 195712
    %1752 = vst.msk [vmem:[#allocation2] sm:$0xff] %vm1751, %v1749
    %1754 = vrot.lane.b32.xlu0 %v1445, 24
    %v1755 = vpop.permute.xlu0 %1754
    %vm1757 = vcmask 261312
    %1758 = vst.msk [vmem:[#allocation2] sm:$0xff] %vm1757, %v1755
    %1759 = vst.msk [vmem:[#allocation2 + $0x8] sm:$0xff] %vm443, %v1518
    %1761 = vrot.lane.b32.xlu0 %v1591, 8
    %v1762 = vpop.permute.xlu0 %1761
    %1764 = vst.msk [vmem:[#allocation2 + $0x8] sm:$0xff] %vm1745, %v1762
    %1766 = vrot.lane.b32.xlu0 %v1664, 16
    %v1767 = vpop.permute.xlu0 %1766
    %1769 = vst.msk [vmem:[#allocation2 + $0x8] sm:$0xff] %vm1751, %v1767
    %1771 = vrot.lane.b32.xlu0 %v1737, 24
    %v1772 = vpop.permute.xlu0 %1771
    %1774 = vst.msk [vmem:[#allocation2 + $0x8] sm:$0xff] %vm1757, %v1772
    %v1775 = vld [vmem:[#allocation2] sm:$0xff]
    %v1776 = vld [vmem:[#allocation2 + $0x8] sm:$0xff]
    %v1777 = vld [vmem:[#allocation11] sm:$0xff]
    %v1778 = vld [vmem:[#allocation11 + $0x8] sm:$0xff]
    %v1779 = vld [vmem:[#allocation11 + $0x10] sm:$0xff]
    %v1780 = vld [vmem:[#allocation11 + $0x18] sm:$0xff]
    %v1781 = vld [vmem:[%s6] sm:$0x1]
    %v1783 = vlaneseq
    %v1784 = vshrl.u32 %v1783, 7
    %v1785 = vsub.s32 0, %v1784
    %v1786 = vrot.slane %v1781, %v1785
    %v1789 = vsel %vm111, %v1775, 0
    %v1792 = vsel %vm111, %v1776, 0
    %1794 = vmatprep.subr.mxu0 0.0
    %1795 = vmatpush1.msra.mxu0 %v1777
    %1796 = vmatprep.subr.mxu0 0.0
    %1797 = vmatpush1.msra.mxu0 %v1778
    %1798 = vmatprep.subr.mxu0 0.0
    %1799 = vmatpush1.msra.mxu0 %v1779
    %1800 = vmatprep.subr.mxu0 0.0
    %1801 = vmatpush1.msra.mxu0 %v1780
    %1802 = vmatprep.subr.mxu0 0.0
    %1803 = vmatpush1.msra.mxu0 0.0
    %1804 = vmatprep.subr.mxu0 0.0
    %1805 = vmatpush1.msra.mxu0 0.0
    %1806 = vmatprep.subr.mxu0 0.0
    %1807 = vmatpush1.msra.mxu0 0.0
    %1808 = vmatprep.subr.mxu0 0.0
    %1809 = vmatpush1.msra.mxu0 0.0
    %1810 = vmatprep.subr.mxu0 0.0
    %1811 = vmatpush1.msra.mxu0 0.0
    %1812 = vmatprep.subr.mxu0 0.0
    %1813 = vmatpush1.msra.mxu0 0.0
    %1814 = vmatprep.subr.mxu0 0.0
    %1815 = vmatpush1.msra.mxu0 0.0
    %1816 = vmatprep.subr.mxu0 0.0
    %1817 = vmatpush1.msra.mxu0 0.0
    %1818 = vmatprep.subr.mxu0 0.0
    %1819 = vmatpush1.msra.mxu0 0.0
    %1820 = vmatprep.subr.mxu0 0.0
    %1821 = vmatpush1.msra.mxu0 0.0
    %1822 = vmatprep.subr.mxu0 0.0
    %1823 = vmatpush1.msra.mxu0 0.0
    %1824 = vmatprep.subr.mxu0 0.0
    %1825 = vmatpush1.msra.mxu0 0.0
    %1826 = vmatprep.subr.mxu0 0.0
    %1827 = vmatpush1.msra.mxu0 0.0
    %1828 = vmatprep.subr.mxu0 0.0
    %1829 = vmatpush1.msra.mxu0 0.0
    %1830 = vmatprep.subr.mxu0 0.0
    %1831 = vmatpush1.msra.mxu0 0.0
    %1832 = vmatprep.subr.mxu0 0.0
    %1833 = vmatpush1.msra.mxu0 0.0
    %1834 = vmatprep.subr.mxu0 0.0
    %1835 = vmatpush1.msra.mxu0 0.0
    %1836 = vmatprep.subr.mxu0 0.0
    %1837 = vmatpush1.msra.mxu0 0.0
    %1838 = vmatprep.subr.mxu0 0.0
    %1839 = vmatpush1.msra.mxu0 0.0
    %1840 = vmatprep.subr.mxu0 0.0
    %1841 = vmatpush1.msra.mxu0 0.0
    %1842 = vmatprep.subr.mxu0 0.0
    %1843 = vmatpush1.msra.mxu0 0.0
    %1844 = vmatprep.subr.mxu0 0.0
    %1845 = vmatpush1.msra.mxu0 0.0
    %1846 = vmatprep.subr.mxu0 0.0
    %1847 = vmatpush1.msra.mxu0 0.0
    %1848 = vmatprep.subr.mxu0 0.0
    %1849 = vmatpush1.msra.mxu0 0.0
    %1850 = vmatprep.subr.mxu0 0.0
    %1851 = vmatpush1.msra.mxu0 0.0
    %1852 = vmatprep.subr.mxu0 0.0
    %1853 = vmatpush1.msra.mxu0 0.0
    %1854 = vmatprep.subr.mxu0 0.0
    %1855 = vmatpush1.msra.mxu0 0.0
    %1856 = vmatprep.subr.mxu0 0.0
    %1857 = vmatpush1.msra.mxu0 0.0
    %1858 = vmatprep.mubr.f32.mxu0 0.0
    %1859 = vmatmul.mubr.f32.gmra.mrb[0].mxu0 %v1789
    %v1860 = vpop.f32.mrb[0].mxu0
    %v1861 = vadd.f32 %v1786, %v1860
    %v1862 = vpop.f32.mrb[0].mxu0
    %1863 = vmatprep.mubr.f32.mxu0 0.0
    %1864 = vmatmul.mubr.f32.gmra.mrb[0].mxu0 %v1792
    %v1865 = vpop.f32.mrb[0].mxu0
    %v1866 = vadd.f32 %v1786, %v1865
    %v1867 = vpop.f32.mrb[0].mxu0
    %1868 = vdwg.mxu0
    %1869 = vst.msk [vmem:[#allocation12] sm:$0xff] %vm111, %v1861
    %1870 = vst.msk [vmem:[#allocation12 + $0x8] sm:$0xff] %vm111, %v1866
    // Predicated region
    $region50: #{tpu_custom_call.1} parent=1 // pred_check
      _
    $region51: #{tpu_custom_call.1} parent=1 // pred_check_branch
      %1872 = sbr.rel (0) target = $region53
    $region52: #{tpu_custom_call.1} parent=1 // pred_region
      %s1874 = ssub.s32 256, 256
      %1875 = vsyncadd [#allocation5], %s1874
      %s1876 = sshll.u32 [#allocation12], 4
      %s1877 = int_to_ptr.vmem [resolvable:$true] %s1876
      %1882 = dma.vmem_to_hbm [thread:$0]  %s1877, 256, %s7, [#allocation5], 128, 128, 8
    $region53: #{tpu_custom_call.1} parent=1 // pred_fallthru
      _
    // Predicated region
    $region54: #{tpu_custom_call.1} parent=1 // pred_check
      _
    $region55: #{tpu_custom_call.1} parent=1 // pred_check_branch
      %1884 = sbr.rel (0) target = $region57
    $region56: #{tpu_custom_call.1} parent=1 // pred_region
      %s1886 = ssub.s32 1024, 1024
      %1887 = vsyncadd [#allocation14], %s1886
      %s1888 = sshll.u32 [#allocation13], 4
      %s1889 = int_to_ptr.vmem [resolvable:$true] %s1888
      %1894 = dma.vmem_to_hbm [thread:$0]  %s1889, 1024, %s8, [#allocation14], 128, 128, 8
    $region57: #{tpu_custom_call.1} parent=1 // pred_fallthru
      _
    // Predicated region
    $region58: #{tpu_custom_call.1} parent=1 // pred_check
      _
    $region59: #{tpu_custom_call.1} parent=1 // pred_check_branch
      %1896 = sbr.rel (0) target = $region61
    $region60: #{tpu_custom_call.1} parent=1 // pred_region
      %1897 = dma.done [#allocation5], 256
    $region61: #{tpu_custom_call.1} parent=1 // pred_fallthru
      _
    // Predicated region
    $region62: #{tpu_custom_call.1} parent=1 // pred_check
      _
    $region63: #{tpu_custom_call.1} parent=1 // pred_check_branch
      %1899 = sbr.rel (0) target = $region65
    $region64: #{tpu_custom_call.1} parent=1 // pred_region
      %1900 = dma.done [#allocation14], 1024
    $region65: #{tpu_custom_call.1} parent=1 // pred_fallthru
      _
    %1901 = vsyncpa [#allocation4], 1
    %1902 = vsyncpa [#allocation7], 1
    %1903 = vsyncpa [#allocation10], 1
    %1904 = vsyncpa [#allocation5], 1
    %1905 = vsyncpa [#allocation14], 1

</llo_original>
